<compile_context>
chip_gen: v7x
topology: tpu7x:2x2x1
jax: 0.10.0
libtpu: 0.0.40
codegen_flags: <defaults>
</compile_context>

<pallas_src>
import jax
import jax.numpy as jnp
from jax import lax
from jax.experimental import pallas as pl
from jax.experimental.pallas import tpu as pltpu


def _debottleneck_kernel(x_ref, w1_ref, s1_ref, b1_ref,
                         w2_ref, s2_ref, b2_ref,
                         w3_ref, s3_ref, b3_ref,
                         mup_ref, mdn_ref, o_ref):
    """Fused bottleneck on one lane-dense (TM, W*C) row tile.

    x_ref  : (TM, W*Cin)         rows = (n, y) pairs, lanes = (x, c); TM = k*H
    w1_ref : (W*Cin, W*Cm)  bf16 block-diagonal 1x1-conv weight
    w2_ref : (3, W*Cm, W*Cm) bf16 banded 3x3-conv weight (one block per ky)
    w3_ref : (W*Cm, W*Cout) bf16 block-diagonal 1x1-conv weight
    s*/b*  : (1, W*C)   f32      folded BatchNorm scale / bias (tiled over W)
    mup/mdn: (TM, 1)    f32      1.0 except at the bottom/top row of each image
    o_ref  : (TM, W*Cout)
    """
    x = x_ref[...]
    x_f32 = x.astype(jnp.float32)            # residual path stays f32
    xb = x.astype(jnp.bfloat16)              # MXU operand

    # ---- conv1 (1x1) + BN1 + ReLU : one matmul, K = W*Cin -------------------
    h1 = jnp.dot(xb, w1_ref[...], preferred_element_type=jnp.float32)
    h1 = jnp.maximum(h1 * s1_ref[...] + b1_ref[...], 0.0)       # (TM, W*Cm) f32

    # ---- conv2 (3x3, pad=1) + BN2 + ReLU ------------------------------------
    # kx taps (and W-edge zero padding) live inside the banded weights;
    # ky taps are sublane rotations (XLU) + precomputed per-image row masks.
    tm = h1.shape[0]
    up = pltpu.roll(h1, tm - 1, 0) * mup_ref[...]   # row r <- h1[r+1]  (y < H-1)
    dn = pltpu.roll(h1, 1, 0) * mdn_ref[...]        # row r <- h1[r-1]  (y > 0)

    acc = jnp.dot(dn.astype(jnp.bfloat16), w2_ref[0],            # ky = 0
                  preferred_element_type=jnp.float32)
    acc += jnp.dot(h1.astype(jnp.bfloat16), w2_ref[1],           # ky = 1
                   preferred_element_type=jnp.float32)
    acc += jnp.dot(up.astype(jnp.bfloat16), w2_ref[2],           # ky = 2
                   preferred_element_type=jnp.float32)
    h2 = jnp.maximum(acc * s2_ref[...] + b2_ref[...], 0.0)       # (TM, W*Cm)

    # ---- conv3 (1x1) + BN3 + residual + ReLU --------------------------------
    h3 = jnp.dot(h2.astype(jnp.bfloat16), w3_ref[...],
                 preferred_element_type=jnp.float32)
    h3 = h3 * s3_ref[...] + b3_ref[...]
    o_ref[...] = jnp.maximum(h3 + x_f32, 0.0).astype(o_ref.dtype)


# ---------------------------------------------------------------------------
# Weight restructuring (pure JAX, hoisted out of the per-call path).
# ---------------------------------------------------------------------------
def _block_diag_1x1(w, W):
    """(Cin, Cout) 1x1-conv weight -> (W*Cin, W*Cout) block-diagonal matmul."""
    ci, co = w.shape
    eye = jnp.eye(W, dtype=w.dtype)
    bd = eye[:, None, :, None] * w[None, :, None, :]             # (W, ci, W, co)
    return bd.reshape(W * ci, W * co)


def _banded_3x3(w2, W):
    """(3,3,Cm,Cm) HWIO weight -> (3, W*Cm, W*Cm) banded matmuls (one per ky).

    Wb[ky][(xi, a), (xo, b)] = w2[ky, xi-xo+1, a, b] when |xi-xo| <= 1 else 0,
    i.e. the kx taps and the zero padding at the W edges are folded in.
    """
    _, _, ci, co = w2.shape
    xi = jnp.arange(W)[:, None]
    xo = jnp.arange(W)[None, :]
    kx = xi - xo + 1                                             # (W, W)
    valid = ((kx >= 0) & (kx <= 2)).astype(w2.dtype)
    blocks = w2[:, jnp.clip(kx, 0, 2)]                           # (3, W, W, ci, co)
    blocks = blocks * valid[None, :, :, None, None]
    return blocks.transpose(0, 1, 3, 2, 4).reshape(3, W * ci, W * co)


def _fold_bn(gamma, beta, mean, var, eps=1e-5):
    scale = gamma / jnp.sqrt(var + eps)
    bias = beta - mean * scale
    return scale.astype(jnp.float32), bias.astype(jnp.float32)


def prepare_debottleneck_params(w1, bn1, w2, bn2, w3, bn3, W, eps=1e-5):
    """Restructure weights once per weight set (not per forward call).

    TODO(synk): the block-diagonal / banded weights scale as W^2*C^2 in VMEM
    and spend W-times the MACs on structural zeros — this is a small-W
    specialization; for large W switch to a (N*H*W, C) pixel-row layout with
    dense K=C matmuls (or tile W inside the kernel).
    """
    s1, b1 = _fold_bn(*bn1, eps)
    s2, b2 = _fold_bn(*bn2, eps)
    s3, b3 = _fold_bn(*bn3, eps)

    def tile(v):  # per-channel -> per-(x, channel) lane vector
        return jnp.tile(v.reshape(-1), W).reshape(1, -1).astype(jnp.float32)

    return dict(
        w1=_block_diag_1x1(w1, W).astype(jnp.bfloat16),
        s1=tile(s1), b1=tile(b1),
        w2=_banded_3x3(w2, W).astype(jnp.bfloat16),
        s2=tile(s2), b2=tile(b2),
        w3=_block_diag_1x1(w3, W).astype(jnp.bfloat16),
        s3=tile(s3), b3=tile(b3),
    )


def _choose_tile_rows(N, H, max_tile_rows):
    """Largest image-aligned tile (multiple of H rows, divides N*H,
    sublane-aligned) not exceeding max_tile_rows."""
    for imgs in range(N, 0, -1):
        tm = imgs * H
        if N % imgs == 0 and tm <= max(max_tile_rows, H) and tm % 8 == 0:
            return tm
    return N * H   # fall back to a single whole-batch tile (always legal)


def debottleneck_pallas(x_nhwc, params, *, max_tile_rows=512):
    """stride=1 / upsample=None DeBottleneck forward (eval-mode BN).

    Pass a bf16 x_nhwc to halve activation HBM traffic (output dtype follows
    the input); BN scale/bias, ReLU and the residual add stay in f32 inside.
    """
    N, H, W, Cin = x_nhwc.shape
    Cout = params["w3"].shape[1] // W
    assert Cout == Cin, "identity residual requires inplanes == planes*4"

    NH = N * H
    tm = _choose_tile_rows(N, H, max_tile_rows)
    x2d = x_nhwc.reshape(NH, W * Cin)                            # lane-dense slab

    # Per-image top/bottom row masks for the ky taps. Identical for every tile
    # because tiles are image-aligned (tm is a multiple of H).
    y = jnp.arange(tm) % H
    mask_up = (y != H - 1).astype(jnp.float32).reshape(tm, 1)
    mask_dn = (y != 0).astype(jnp.float32).reshape(tm, 1)

    const_args = (params["w1"], params["s1"], params["b1"],
                  params["w2"], params["s2"], params["b2"],
                  params["w3"], params["s3"], params["b3"],
                  mask_up, mask_dn)

    def const_spec(a, single_buffer):
        zeros = (0,) * a.ndim
        idx = lambda i, _z=zeros: _z
        if single_buffer:
            # Constant index_map -> never re-fetched; don't waste VMEM on a
            # second buffer (matters as W*C grows / on v7x's 64 MiB VMEM).
            return pl.BlockSpec(a.shape, idx, pipeline_mode=pl.Buffered(1))
        return pl.BlockSpec(a.shape, idx)

    def run(single_buffer_consts):
        in_specs = [pl.BlockSpec((tm, W * Cin), lambda i: (i, 0))]
        in_specs += [const_spec(a, single_buffer_consts) for a in const_args]
        fn = pl.pallas_call(
            _debottleneck_kernel,
            out_shape=jax.ShapeDtypeStruct((NH, W * Cout), x_nhwc.dtype),
            grid_spec=pltpu.PrefetchScalarGridSpec(
                num_scalar_prefetch=0,
                grid=(NH // tm,),                    # row tiles stream/pipeline
                in_specs=in_specs,
                out_specs=pl.BlockSpec((tm, W * Cout), lambda i: (i, 0)),
            ),
            compiler_params=pltpu.CompilerParams(
                # Row tiles are independent -> megacore sharding on v7x.
                dimension_semantics=("parallel",),
                # Plenty for <=1024-row tiles + small-W weights. Raise together
                # with max_tile_rows on 128 MiB parts (v5e/v6e); keep tiles
                # such that 2x(in+out) + weights stays under ~48 MiB on v7x.
                vmem_limit_bytes=32 * 1024 * 1024),
        )
        return fn(x2d, *const_args)

    try:
        out2d = jax.block_until_ready(run(True))
    except Exception:  # jax without Buffered(1) support on pallas_call inputs
        out2d = jax.block_until_ready(run(False))

    return out2d.reshape(N, H, W, Cout)


# ---------------------------------------------------------------------------
# Pure-JAX reference of the PyTorch forward (eval-mode BN), NHWC.
# ---------------------------------------------------------------------------
def _reference_nhwc(x, w1, w2, w3, bn1, bn2, bn3, eps=1e-5):
    def bn(y, p):
        g, b, m, v = p
        return (y - m) / jnp.sqrt(v + eps) * g + b

    dn = ('NHWC', 'HWIO', 'NHWC')
    out = lax.conv_general_dilated(x, w1.reshape(1, 1, *w1.shape),
                                   (1, 1), 'VALID', dimension_numbers=dn)
    out = jax.nn.relu(bn(out, bn1))
    out = lax.conv_general_dilated(out, w2, (1, 1), ((1, 1), (1, 1)),
                                   dimension_numbers=dn)
    out = jax.nn.relu(bn(out, bn2))
    out = lax.conv_general_dilated(out, w3.reshape(1, 1, *w3.shape),
                                   (1, 1), 'VALID', dimension_numbers=dn)
    out = bn(out, bn3)
    return jax.nn.relu(out + x)


if __name__ == "__main__":
    # DeBottleneck(inplanes=32, planes=8), stride=1, upsample=None
    # -> width = 8, out channels = planes * expansion = 32 == inplanes.
    N, H, W = 4, 8, 8
    inplanes, planes = 32, 8
    width = planes                     # base_width=64, groups=1
    cout = planes * 4

    key = jax.random.PRNGKey(0)
    ks = jax.random.split(key, 8)

    # Input in NHWC (equivalent NCHW shape: (4, 32, 8, 8)).
    x = jax.random.normal(ks[0], (N, H, W, inplanes), jnp.float32)

    # Conv weights (1x1 weights as (Cin, Cout) matmuls, 3x3 in HWIO).
    w1 = jax.random.normal(ks[1], (inplanes, width), jnp.float32) * 0.1
    w2 = jax.random.normal(ks[2], (3, 3, width, width), jnp.float32) * 0.1
    w3 = jax.random.normal(ks[3], (width, cout), jnp.float32) * 0.1

    # BatchNorm (eval mode: running stats), deterministic.
    def bn_params(k, c):
        k1, k2, k3, k4 = jax.random.split(k, 4)
        gamma = 1.0 + 0.1 * jax.random.normal(k1, (c,), jnp.float32)
        beta = 0.1 * jax.random.normal(k2, (c,), jnp.float32)
        mean = 0.1 * jax.random.normal(k3, (c,), jnp.float32)
        var = 0.5 + jax.random.uniform(k4, (c,), jnp.float32)
        return gamma, beta, mean, var

    bn1 = bn_params(ks[4], width)
    bn2 = bn_params(ks[5], width)
    bn3 = bn_params(ks[6], cout)

    # Weight restructuring happens once, outside the per-call path.
    params = prepare_debottleneck_params(w1, bn1, w2, bn2, w3, bn3, W)

    # max_tile_rows=16 -> 2 images per tile -> grid=(2,): exercises the
    # pipelined, "parallel" row tiling even at this tiny demo size.
    out = jax.block_until_ready(
        debottleneck_pallas(x, params, max_tile_rows=16))

    ref = jax.block_until_ready(_reference_nhwc(x, w1, w2, w3, bn1, bn2, bn3))
    assert out.shape == (N, H, W, cout)
    # bf16 MXU operands through three chained matmuls vs. f32 reference.
    max_err = float(jnp.max(jnp.abs(out - ref)))
    assert jnp.allclose(out, ref, atol=5e-2, rtol=5e-2), max_err

    print("KERNEL_OK")
</pallas_src>

<mosaic_0001>
module attributes {stable_mosaic.version = 11 : i64} {
  func.func @_debottleneck_kernel(%arg0: i32, %arg1: memref<16x256xf32, #tpu.memory_space<vmem>>, %arg2: memref<256x64xbf16, #tpu.memory_space<vmem>>, %arg3: memref<1x64xf32, #tpu.memory_space<vmem>>, %arg4: memref<1x64xf32, #tpu.memory_space<vmem>>, %arg5: memref<3x64x64xbf16, #tpu.memory_space<vmem>>, %arg6: memref<1x64xf32, #tpu.memory_space<vmem>>, %arg7: memref<1x64xf32, #tpu.memory_space<vmem>>, %arg8: memref<64x256xbf16, #tpu.memory_space<vmem>>, %arg9: memref<1x256xf32, #tpu.memory_space<vmem>>, %arg10: memref<1x256xf32, #tpu.memory_space<vmem>>, %arg11: memref<16x1xf32, #tpu.memory_space<vmem>>, %arg12: memref<16x1xf32, #tpu.memory_space<vmem>>, %arg13: memref<16x256xf32, #tpu.memory_space<vmem>>) attributes {dimension_semantics = [#tpu.dimension_semantics<parallel>], iteration_bounds = array<i64: 2>, scalar_prefetch = 0 : i64, scratch_operands = 0 : i64, tpu.core_type = #tpu.core_type<tc>, window_params = [{transform_indices = @transform_0, window_bounds = array<i64: 16, 256>}, {pipeline_mode = #tpu.pipeline_mode<synchronous>, transform_indices = @transform_1, window_bounds = array<i64: 256, 64>}, {pipeline_mode = #tpu.pipeline_mode<synchronous>, transform_indices = @transform_2, window_bounds = array<i64: 1, 64>}, {pipeline_mode = #tpu.pipeline_mode<synchronous>, transform_indices = @transform_3, window_bounds = array<i64: 1, 64>}, {pipeline_mode = #tpu.pipeline_mode<synchronous>, transform_indices = @transform_4, window_bounds = array<i64: 3, 64, 64>}, {pipeline_mode = #tpu.pipeline_mode<synchronous>, transform_indices = @transform_5, window_bounds = array<i64: 1, 64>}, {pipeline_mode = #tpu.pipeline_mode<synchronous>, transform_indices = @transform_6, window_bounds = array<i64: 1, 64>}, {pipeline_mode = #tpu.pipeline_mode<synchronous>, transform_indices = @transform_7, window_bounds = array<i64: 64, 256>}, {pipeline_mode = #tpu.pipeline_mode<synchronous>, transform_indices = @transform_8, window_bounds = array<i64: 1, 256>}, {pipeline_mode = #tpu.pipeline_mode<synchronous>, transform_indices = @transform_9, window_bounds = array<i64: 1, 256>}, {pipeline_mode = #tpu.pipeline_mode<synchronous>, transform_indices = @transform_10, window_bounds = array<i64: 16, 1>}, {pipeline_mode = #tpu.pipeline_mode<synchronous>, transform_indices = @transform_11, window_bounds = array<i64: 16, 1>}, {transform_indices = @transform_12, window_bounds = array<i64: 16, 256>}]} {
    %c0 = arith.constant 0 : index
    %c0_0 = arith.constant 0 : index
    %0 = vector.load %arg1[%c0, %c0_0] : memref<16x256xf32, #tpu.memory_space<vmem>>, vector<16x256xf32>
    %1 = arith.truncf %0 : vector<16x256xf32> to vector<16x256xbf16>
    %c0_1 = arith.constant 0 : index
    %c0_2 = arith.constant 0 : index
    %2 = vector.load %arg2[%c0_1, %c0_2] : memref<256x64xbf16, #tpu.memory_space<vmem>>, vector<256x64xbf16>
    %cst = arith.constant dense<0.000000e+00> : vector<16x64xf32>
    %3 = tpu.matmul %1, %2, %cst {dimension_numbers = #tpu.dot_dimension_numbers<[1], [0], [0], [1], [0, 0, 1, 1], [], []>} : vector<16x256xbf16>, vector<256x64xbf16>, vector<16x64xf32> -> vector<16x64xf32>
    %c0_3 = arith.constant 0 : index
    %c0_4 = arith.constant 0 : index
    %4 = vector.load %arg3[%c0_3, %c0_4] : memref<1x64xf32, #tpu.memory_space<vmem>>, vector<1x64xf32>
    %5 = vector.broadcast %4 : vector<1x64xf32> to vector<16x64xf32>
    %6 = arith.mulf %3, %5 : vector<16x64xf32>
    %c0_5 = arith.constant 0 : index
    %c0_6 = arith.constant 0 : index
    %7 = vector.load %arg4[%c0_5, %c0_6] : memref<1x64xf32, #tpu.memory_space<vmem>>, vector<1x64xf32>
    %8 = vector.broadcast %7 : vector<1x64xf32> to vector<16x64xf32>
    %9 = arith.addf %6, %8 : vector<16x64xf32>
    %cst_7 = arith.constant 0.000000e+00 : f32
    %10 = vector.broadcast %cst_7 : f32 to vector<16x64xf32>
    %11 = arith.maximumf %9, %10 : vector<16x64xf32>
    %c15_i32 = arith.constant 15 : i32
    %12 = tpu.dynamic_rotate %11 by %c15_i32 dim 0 : vector<16x64xf32>, i32 -> vector<16x64xf32>
    %c0_8 = arith.constant 0 : index
    %c0_9 = arith.constant 0 : index
    %13 = vector.load %arg11[%c0_8, %c0_9] : memref<16x1xf32, #tpu.memory_space<vmem>>, vector<16x1xf32>
    %14 = vector.broadcast %13 : vector<16x1xf32> to vector<16x64xf32>
    %15 = arith.mulf %12, %14 : vector<16x64xf32>
    %c1_i32 = arith.constant 1 : i32
    %16 = tpu.dynamic_rotate %11 by %c1_i32 dim 0 : vector<16x64xf32>, i32 -> vector<16x64xf32>
    %c0_10 = arith.constant 0 : index
    %c0_11 = arith.constant 0 : index
    %17 = vector.load %arg12[%c0_10, %c0_11] : memref<16x1xf32, #tpu.memory_space<vmem>>, vector<16x1xf32>
    %18 = vector.broadcast %17 : vector<16x1xf32> to vector<16x64xf32>
    %19 = arith.mulf %16, %18 : vector<16x64xf32>
    %20 = arith.truncf %19 : vector<16x64xf32> to vector<16x64xbf16>
    %c0_12 = arith.constant 0 : index
    %c0_13 = arith.constant 0 : index
    %c0_14 = arith.constant 0 : index
    %21 = vector.load %arg5[%c0_12, %c0_13, %c0_14] : memref<3x64x64xbf16, #tpu.memory_space<vmem>>, vector<1x64x64xbf16>
    %22 = vector.shape_cast %21 : vector<1x64x64xbf16> to vector<64x64xbf16>
    %cst_15 = arith.constant dense<0.000000e+00> : vector<16x64xf32>
    %23 = tpu.matmul %20, %22, %cst_15 {dimension_numbers = #tpu.dot_dimension_numbers<[1], [0], [0], [1], [0, 0, 1, 1], [], []>} : vector<16x64xbf16>, vector<64x64xbf16>, vector<16x64xf32> -> vector<16x64xf32>
    %24 = arith.truncf %11 : vector<16x64xf32> to vector<16x64xbf16>
    %c1 = arith.constant 1 : index
    %c0_16 = arith.constant 0 : index
    %c0_17 = arith.constant 0 : index
    %25 = vector.load %arg5[%c1, %c0_16, %c0_17] : memref<3x64x64xbf16, #tpu.memory_space<vmem>>, vector<1x64x64xbf16>
    %26 = vector.shape_cast %25 : vector<1x64x64xbf16> to vector<64x64xbf16>
    %cst_18 = arith.constant dense<0.000000e+00> : vector<16x64xf32>
    %27 = tpu.matmul %24, %26, %cst_18 {dimension_numbers = #tpu.dot_dimension_numbers<[1], [0], [0], [1], [0, 0, 1, 1], [], []>} : vector<16x64xbf16>, vector<64x64xbf16>, vector<16x64xf32> -> vector<16x64xf32>
    %28 = arith.addf %23, %27 : vector<16x64xf32>
    %29 = arith.truncf %15 : vector<16x64xf32> to vector<16x64xbf16>
    %c2 = arith.constant 2 : index
    %c0_19 = arith.constant 0 : index
    %c0_20 = arith.constant 0 : index
    %30 = vector.load %arg5[%c2, %c0_19, %c0_20] : memref<3x64x64xbf16, #tpu.memory_space<vmem>>, vector<1x64x64xbf16>
    %31 = vector.shape_cast %30 : vector<1x64x64xbf16> to vector<64x64xbf16>
    %cst_21 = arith.constant dense<0.000000e+00> : vector<16x64xf32>
    %32 = tpu.matmul %29, %31, %cst_21 {dimension_numbers = #tpu.dot_dimension_numbers<[1], [0], [0], [1], [0, 0, 1, 1], [], []>} : vector<16x64xbf16>, vector<64x64xbf16>, vector<16x64xf32> -> vector<16x64xf32>
    %33 = arith.addf %28, %32 : vector<16x64xf32>
    %c0_22 = arith.constant 0 : index
    %c0_23 = arith.constant 0 : index
    %34 = vector.load %arg6[%c0_22, %c0_23] : memref<1x64xf32, #tpu.memory_space<vmem>>, vector<1x64xf32>
    %35 = vector.broadcast %34 : vector<1x64xf32> to vector<16x64xf32>
    %36 = arith.mulf %33, %35 : vector<16x64xf32>
    %c0_24 = arith.constant 0 : index
    %c0_25 = arith.constant 0 : index
    %37 = vector.load %arg7[%c0_24, %c0_25] : memref<1x64xf32, #tpu.memory_space<vmem>>, vector<1x64xf32>
    %38 = vector.broadcast %37 : vector<1x64xf32> to vector<16x64xf32>
    %39 = arith.addf %36, %38 : vector<16x64xf32>
    %cst_26 = arith.constant 0.000000e+00 : f32
    %40 = vector.broadcast %cst_26 : f32 to vector<16x64xf32>
    %41 = arith.maximumf %39, %40 : vector<16x64xf32>
    %42 = arith.truncf %41 : vector<16x64xf32> to vector<16x64xbf16>
    %c0_27 = arith.constant 0 : index
    %c0_28 = arith.constant 0 : index
    %43 = vector.load %arg8[%c0_27, %c0_28] : memref<64x256xbf16, #tpu.memory_space<vmem>>, vector<64x256xbf16>
    %cst_29 = arith.constant dense<0.000000e+00> : vector<16x256xf32>
    %44 = tpu.matmul %42, %43, %cst_29 {dimension_numbers = #tpu.dot_dimension_numbers<[1], [0], [0], [1], [0, 0, 1, 1], [], []>} : vector<16x64xbf16>, vector<64x256xbf16>, vector<16x256xf32> -> vector<16x256xf32>
    %c0_30 = arith.constant 0 : index
    %c0_31 = arith.constant 0 : index
    %45 = vector.load %arg9[%c0_30, %c0_31] : memref<1x256xf32, #tpu.memory_space<vmem>>, vector<1x256xf32>
    %46 = vector.broadcast %45 : vector<1x256xf32> to vector<16x256xf32>
    %47 = arith.mulf %44, %46 : vector<16x256xf32>
    %c0_32 = arith.constant 0 : index
    %c0_33 = arith.constant 0 : index
    %48 = vector.load %arg10[%c0_32, %c0_33] : memref<1x256xf32, #tpu.memory_space<vmem>>, vector<1x256xf32>
    %49 = vector.broadcast %48 : vector<1x256xf32> to vector<16x256xf32>
    %50 = arith.addf %47, %49 : vector<16x256xf32>
    %51 = arith.addf %50, %0 : vector<16x256xf32>
    %cst_34 = arith.constant 0.000000e+00 : f32
    %52 = vector.broadcast %cst_34 : f32 to vector<16x256xf32>
    %53 = arith.maximumf %51, %52 : vector<16x256xf32>
    %c0_35 = arith.constant 0 : index
    %c0_36 = arith.constant 0 : index
    %54 = vector.load %arg13[%c0_35, %c0_36] : memref<16x256xf32, #tpu.memory_space<vmem>>, vector<16x256xf32>
    tpu.vector_store %arg13[%c0_35, %c0_36], %53 {strides = array<i32>} : memref<16x256xf32, #tpu.memory_space<vmem>>, vector<16x256xf32>,
    return
  }
  func.func @transform_0(%arg0: i32) -> (i32, i32) {
    %c0_i32 = arith.constant 0 : i32
    %c0_i32_0 = arith.constant 0 : i32
    return %arg0, %c0_i32 : i32, i32
  }
  func.func @transform_1(%arg0: i32) -> (i32, i32) {
    %c0_i32 = arith.constant 0 : i32
    %c0_i32_0 = arith.constant 0 : i32
    %c0_i32_1 = arith.constant 0 : i32
    return %c0_i32, %c0_i32_0 : i32, i32
  }
  func.func @transform_2(%arg0: i32) -> (i32, i32) {
    %c0_i32 = arith.constant 0 : i32
    %c0_i32_0 = arith.constant 0 : i32
    %c0_i32_1 = arith.constant 0 : i32
    return %c0_i32, %c0_i32_0 : i32, i32
  }
  func.func @transform_3(%arg0: i32) -> (i32, i32) {
    %c0_i32 = arith.constant 0 : i32
    %c0_i32_0 = arith.constant 0 : i32
    %c0_i32_1 = arith.constant 0 : i32
    return %c0_i32, %c0_i32_0 : i32, i32
  }
  func.func @transform_4(%arg0: i32) -> (i32, i32, i32) {
    %c0_i32 = arith.constant 0 : i32
    %c0_i32_0 = arith.constant 0 : i32
    %c0_i32_1 = arith.constant 0 : i32
    %c0_i32_2 = arith.constant 0 : i32
    return %c0_i32, %c0_i32_0, %c0_i32_1 : i32, i32, i32
  }
  func.func @transform_5(%arg0: i32) -> (i32, i32) {
    %c0_i32 = arith.constant 0 : i32
    %c0_i32_0 = arith.constant 0 : i32
    %c0_i32_1 = arith.constant 0 : i32
    return %c0_i32, %c0_i32_0 : i32, i32
  }
  func.func @transform_6(%arg0: i32) -> (i32, i32) {
    %c0_i32 = arith.constant 0 : i32
    %c0_i32_0 = arith.constant 0 : i32
    %c0_i32_1 = arith.constant 0 : i32
    return %c0_i32, %c0_i32_0 : i32, i32
  }
  func.func @transform_7(%arg0: i32) -> (i32, i32) {
    %c0_i32 = arith.constant 0 : i32
    %c0_i32_0 = arith.constant 0 : i32
    %c0_i32_1 = arith.constant 0 : i32
    return %c0_i32, %c0_i32_0 : i32, i32
  }
  func.func @transform_8(%arg0: i32) -> (i32, i32) {
    %c0_i32 = arith.constant 0 : i32
    %c0_i32_0 = arith.constant 0 : i32
    %c0_i32_1 = arith.constant 0 : i32
    return %c0_i32, %c0_i32_0 : i32, i32
  }
  func.func @transform_9(%arg0: i32) -> (i32, i32) {
    %c0_i32 = arith.constant 0 : i32
    %c0_i32_0 = arith.constant 0 : i32
    %c0_i32_1 = arith.constant 0 : i32
    return %c0_i32, %c0_i32_0 : i32, i32
  }
  func.func @transform_10(%arg0: i32) -> (i32, i32) {
    %c0_i32 = arith.constant 0 : i32
    %c0_i32_0 = arith.constant 0 : i32
    %c0_i32_1 = arith.constant 0 : i32
    return %c0_i32, %c0_i32_0 : i32, i32
  }
  func.func @transform_11(%arg0: i32) -> (i32, i32) {
    %c0_i32 = arith.constant 0 : i32
    %c0_i32_0 = arith.constant 0 : i32
    %c0_i32_1 = arith.constant 0 : i32
    return %c0_i32, %c0_i32_0 : i32, i32
  }
  func.func @transform_12(%arg0: i32) -> (i32, i32) {
    %c0_i32 = arith.constant 0 : i32
    %c0_i32_0 = arith.constant 0 : i32
    return %arg0, %c0_i32 : i32, i32
  }
}

module attributes {stable_mosaic.version = 11 : i64} {
  func.func @_debottleneck_kernel(%arg0: i32, %arg1: memref<16x256xf32, #tpu.memory_space<vmem>>, %arg2: memref<256x64xbf16, #tpu.memory_space<vmem>>, %arg3: memref<1x64xf32, #tpu.memory_space<vmem>>, %arg4: memref<1x64xf32, #tpu.memory_space<vmem>>, %arg5: memref<3x64x64xbf16, #tpu.memory_space<vmem>>, %arg6: memref<1x64xf32, #tpu.memory_space<vmem>>, %arg7: memref<1x64xf32, #tpu.memory_space<vmem>>, %arg8: memref<64x256xbf16, #tpu.memory_space<vmem>>, %arg9: memref<1x256xf32, #tpu.memory_space<vmem>>, %arg10: memref<1x256xf32, #tpu.memory_space<vmem>>, %arg11: memref<16x1xf32, #tpu.memory_space<vmem>>, %arg12: memref<16x1xf32, #tpu.memory_space<vmem>>, %arg13: memref<16x256xf32, #tpu.memory_space<vmem>>) attributes {dimension_semantics = [#tpu.dimension_semantics<parallel>], iteration_bounds = array<i64: 2>, scalar_prefetch = 0 : i64, scratch_operands = 0 : i64, tpu.core_type = #tpu.core_type<tc>, window_params = [{transform_indices = @transform_0, window_bounds = array<i64: 16, 256>}, {pipeline_mode = #tpu.pipeline_mode<synchronous>, transform_indices = @transform_1, window_bounds = array<i64: 256, 64>}, {pipeline_mode = #tpu.pipeline_mode<synchronous>, transform_indices = @transform_2, window_bounds = array<i64: 1, 64>}, {pipeline_mode = #tpu.pipeline_mode<synchronous>, transform_indices = @transform_3, window_bounds = array<i64: 1, 64>}, {pipeline_mode = #tpu.pipeline_mode<synchronous>, transform_indices = @transform_4, window_bounds = array<i64: 3, 64, 64>}, {pipeline_mode = #tpu.pipeline_mode<synchronous>, transform_indices = @transform_5, window_bounds = array<i64: 1, 64>}, {pipeline_mode = #tpu.pipeline_mode<synchronous>, transform_indices = @transform_6, window_bounds = array<i64: 1, 64>}, {pipeline_mode = #tpu.pipeline_mode<synchronous>, transform_indices = @transform_7, window_bounds = array<i64: 64, 256>}, {pipeline_mode = #tpu.pipeline_mode<synchronous>, transform_indices = @transform_8, window_bounds = array<i64: 1, 256>}, {pipeline_mode = #tpu.pipeline_mode<synchronous>, transform_indices = @transform_9, window_bounds = array<i64: 1, 256>}, {pipeline_mode = #tpu.pipeline_mode<synchronous>, transform_indices = @transform_10, window_bounds = array<i64: 16, 1>}, {pipeline_mode = #tpu.pipeline_mode<synchronous>, transform_indices = @transform_11, window_bounds = array<i64: 16, 1>}, {transform_indices = @transform_12, window_bounds = array<i64: 16, 256>}]} {
    %c0 = arith.constant 0 : index
    %c0_0 = arith.constant 0 : index
    %0 = vector.load %arg1[%c0, %c0_0] : memref<16x256xf32, #tpu.memory_space<vmem>>, vector<16x256xf32>
    %1 = arith.truncf %0 : vector<16x256xf32> to vector<16x256xbf16>
    %c0_1 = arith.constant 0 : index
    %c0_2 = arith.constant 0 : index
    %2 = vector.load %arg2[%c0_1, %c0_2] : memref<256x64xbf16, #tpu.memory_space<vmem>>, vector<256x64xbf16>
    %cst = arith.constant dense<0.000000e+00> : vector<16x64xf32>
    %3 = tpu.matmul %1, %2, %cst {dimension_numbers = #tpu.dot_dimension_numbers<[1], [0], [0], [1], [0, 0, 1, 1], [], []>} : vector<16x256xbf16>, vector<256x64xbf16>, vector<16x64xf32> -> vector<16x64xf32>
    %c0_3 = arith.constant 0 : index
    %c0_4 = arith.constant 0 : index
    %4 = vector.load %arg3[%c0_3, %c0_4] : memref<1x64xf32, #tpu.memory_space<vmem>>, vector<1x64xf32>
    %5 = vector.broadcast %4 : vector<1x64xf32> to vector<16x64xf32>
    %6 = arith.mulf %3, %5 : vector<16x64xf32>
    %c0_5 = arith.constant 0 : index
    %c0_6 = arith.constant 0 : index
    %7 = vector.load %arg4[%c0_5, %c0_6] : memref<1x64xf32, #tpu.memory_space<vmem>>, vector<1x64xf32>
    %8 = vector.broadcast %7 : vector<1x64xf32> to vector<16x64xf32>
    %9 = arith.addf %6, %8 : vector<16x64xf32>
    %cst_7 = arith.constant 0.000000e+00 : f32
    %10 = vector.broadcast %cst_7 : f32 to vector<16x64xf32>
    %11 = arith.maximumf %9, %10 : vector<16x64xf32>
    %c15_i32 = arith.constant 15 : i32
    %12 = tpu.dynamic_rotate %11 by %c15_i32 dim 0 : vector<16x64xf32>, i32 -> vector<16x64xf32>
    %c0_8 = arith.constant 0 : index
    %c0_9 = arith.constant 0 : index
    %13 = vector.load %arg11[%c0_8, %c0_9] : memref<16x1xf32, #tpu.memory_space<vmem>>, vector<16x1xf32>
    %14 = vector.broadcast %13 : vector<16x1xf32> to vector<16x64xf32>
    %15 = arith.mulf %12, %14 : vector<16x64xf32>
    %c1_i32 = arith.constant 1 : i32
    %16 = tpu.dynamic_rotate %11 by %c1_i32 dim 0 : vector<16x64xf32>, i32 -> vector<16x64xf32>
    %c0_10 = arith.constant 0 : index
    %c0_11 = arith.constant 0 : index
    %17 = vector.load %arg12[%c0_10, %c0_11] : memref<16x1xf32, #tpu.memory_space<vmem>>, vector<16x1xf32>
    %18 = vector.broadcast %17 : vector<16x1xf32> to vector<16x64xf32>
    %19 = arith.mulf %16, %18 : vector<16x64xf32>
    %20 = arith.truncf %19 : vector<16x64xf32> to vector<16x64xbf16>
    %c0_12 = arith.constant 0 : index
    %c0_13 = arith.constant 0 : index
    %c0_14 = arith.constant 0 : index
    %21 = vector.load %arg5[%c0_12, %c0_13, %c0_14] : memref<3x64x64xbf16, #tpu.memory_space<vmem>>, vector<1x64x64xbf16>
    %22 = vector.shape_cast %21 : vector<1x64x64xbf16> to vector<64x64xbf16>
    %cst_15 = arith.constant dense<0.000000e+00> : vector<16x64xf32>
    %23 = tpu.matmul %20, %22, %cst_15 {dimension_numbers = #tpu.dot_dimension_numbers<[1], [0], [0], [1], [0, 0, 1, 1], [], []>} : vector<16x64xbf16>, vector<64x64xbf16>, vector<16x64xf32> -> vector<16x64xf32>
    %24 = arith.truncf %11 : vector<16x64xf32> to vector<16x64xbf16>
    %c1 = arith.constant 1 : index
    %c0_16 = arith.constant 0 : index
    %c0_17 = arith.constant 0 : index
    %25 = vector.load %arg5[%c1, %c0_16, %c0_17] : memref<3x64x64xbf16, #tpu.memory_space<vmem>>, vector<1x64x64xbf16>
    %26 = vector.shape_cast %25 : vector<1x64x64xbf16> to vector<64x64xbf16>
    %cst_18 = arith.constant dense<0.000000e+00> : vector<16x64xf32>
    %27 = tpu.matmul %24, %26, %cst_18 {dimension_numbers = #tpu.dot_dimension_numbers<[1], [0], [0], [1], [0, 0, 1, 1], [], []>} : vector<16x64xbf16>, vector<64x64xbf16>, vector<16x64xf32> -> vector<16x64xf32>
    %28 = arith.addf %23, %27 : vector<16x64xf32>
    %29 = arith.truncf %15 : vector<16x64xf32> to vector<16x64xbf16>
    %c2 = arith.constant 2 : index
    %c0_19 = arith.constant 0 : index
    %c0_20 = arith.constant 0 : index
    %30 = vector.load %arg5[%c2, %c0_19, %c0_20] : memref<3x64x64xbf16, #tpu.memory_space<vmem>>, vector<1x64x64xbf16>
    %31 = vector.shape_cast %30 : vector<1x64x64xbf16> to vector<64x64xbf16>
    %cst_21 = arith.constant dense<0.000000e+00> : vector<16x64xf32>
    %32 = tpu.matmul %29, %31, %cst_21 {dimension_numbers = #tpu.dot_dimension_numbers<[1], [0], [0], [1], [0, 0, 1, 1], [], []>} : vector<16x64xbf16>, vector<64x64xbf16>, vector<16x64xf32> -> vector<16x64xf32>
    %33 = arith.addf %28, %32 : vector<16x64xf32>
    %c0_22 = arith.constant 0 : index
    %c0_23 = arith.constant 0 : index
    %34 = vector.load %arg6[%c0_22, %c0_23] : memref<1x64xf32, #tpu.memory_space<vmem>>, vector<1x64xf32>
    %35 = vector.broadcast %34 : vector<1x64xf32> to vector<16x64xf32>
    %36 = arith.mulf %33, %35 : vector<16x64xf32>
    %c0_24 = arith.constant 0 : index
    %c0_25 = arith.constant 0 : index
    %37 = vector.load %arg7[%c0_24, %c0_25] : memref<1x64xf32, #tpu.memory_space<vmem>>, vector<1x64xf32>
    %38 = vector.broadcast %37 : vector<1x64xf32> to vector<16x64xf32>
    %39 = arith.addf %36, %38 : vector<16x64xf32>
    %cst_26 = arith.constant 0.000000e+00 : f32
    %40 = vector.broadcast %cst_26 : f32 to vector<16x64xf32>
    %41 = arith.maximumf %39, %40 : vector<16x64xf32>
    %42 = arith.truncf %41 : vector<16x64xf32> to vector<16x64xbf16>
    %c0_27 = arith.constant 0 : index
    %c0_28 = arith.constant 0 : index
    %43 = vector.load %arg8[%c0_27, %c0_28] : memref<64x256xbf16, #tpu.memory_space<vmem>>, vector<64x256xbf16>
    %cst_29 = arith.constant dense<0.000000e+00> : vector<16x256xf32>
    %44 = tpu.matmul %42, %43, %cst_29 {dimension_numbers = #tpu.dot_dimension_numbers<[1], [0], [0], [1], [0, 0, 1, 1], [], []>} : vector<16x64xbf16>, vector<64x256xbf16>, vector<16x256xf32> -> vector<16x256xf32>
    %c0_30 = arith.constant 0 : index
    %c0_31 = arith.constant 0 : index
    %45 = vector.load %arg9[%c0_30, %c0_31] : memref<1x256xf32, #tpu.memory_space<vmem>>, vector<1x256xf32>
    %46 = vector.broadcast %45 : vector<1x256xf32> to vector<16x256xf32>
    %47 = arith.mulf %44, %46 : vector<16x256xf32>
    %c0_32 = arith.constant 0 : index
    %c0_33 = arith.constant 0 : index
    %48 = vector.load %arg10[%c0_32, %c0_33] : memref<1x256xf32, #tpu.memory_space<vmem>>, vector<1x256xf32>
    %49 = vector.broadcast %48 : vector<1x256xf32> to vector<16x256xf32>
    %50 = arith.addf %47, %49 : vector<16x256xf32>
    %51 = arith.addf %50, %0 : vector<16x256xf32>
    %cst_34 = arith.constant 0.000000e+00 : f32
    %52 = vector.broadcast %cst_34 : f32 to vector<16x256xf32>
    %53 = arith.maximumf %51, %52 : vector<16x256xf32>
    %c0_35 = arith.constant 0 : index
    %c0_36 = arith.constant 0 : index
    %54 = vector.load %arg13[%c0_35, %c0_36] : memref<16x256xf32, #tpu.memory_space<vmem>>, vector<16x256xf32>
    tpu.vector_store %arg13[%c0_35, %c0_36], %53 {strides = array<i32>} : memref<16x256xf32, #tpu.memory_space<vmem>>, vector<16x256xf32>,
    return
  }
  func.func @transform_0(%arg0: i32) -> (i32, i32) {
    %c0_i32 = arith.constant 0 : i32
    %c0_i32_0 = arith.constant 0 : i32
    return %arg0, %c0_i32 : i32, i32
  }
  func.func @transform_1(%arg0: i32) -> (i32, i32) {
    %c0_i32 = arith.constant 0 : i32
    %c0_i32_0 = arith.constant 0 : i32
    %c0_i32_1 = arith.constant 0 : i32
    return %c0_i32, %c0_i32_0 : i32, i32
  }
  func.func @transform_2(%arg0: i32) -> (i32, i32) {
    %c0_i32 = arith.constant 0 : i32
    %c0_i32_0 = arith.constant 0 : i32
    %c0_i32_1 = arith.constant 0 : i32
    return %c0_i32, %c0_i32_0 : i32, i32
  }
  func.func @transform_3(%arg0: i32) -> (i32, i32) {
    %c0_i32 = arith.constant 0 : i32
    %c0_i32_0 = arith.constant 0 : i32
    %c0_i32_1 = arith.constant 0 : i32
    return %c0_i32, %c0_i32_0 : i32, i32
  }
  func.func @transform_4(%arg0: i32) -> (i32, i32, i32) {
    %c0_i32 = arith.constant 0 : i32
    %c0_i32_0 = arith.constant 0 : i32
    %c0_i32_1 = arith.constant 0 : i32
    %c0_i32_2 = arith.constant 0 : i32
    return %c0_i32, %c0_i32_0, %c0_i32_1 : i32, i32, i32
  }
  func.func @transform_5(%arg0: i32) -> (i32, i32) {
    %c0_i32 = arith.constant 0 : i32
    %c0_i32_0 = arith.constant 0 : i32
    %c0_i32_1 = arith.constant 0 : i32
    return %c0_i32, %c0_i32_0 : i32, i32
  }
  func.func @transform_6(%arg0: i32) -> (i32, i32) {
    %c0_i32 = arith.constant 0 : i32
    %c0_i32_0 = arith.constant 0 : i32
    %c0_i32_1 = arith.constant 0 : i32
    return %c0_i32, %c0_i32_0 : i32, i32
  }
  func.func @transform_7(%arg0: i32) -> (i32, i32) {
    %c0_i32 = arith.constant 0 : i32
    %c0_i32_0 = arith.constant 0 : i32
    %c0_i32_1 = arith.constant 0 : i32
    return %c0_i32, %c0_i32_0 : i32, i32
  }
  func.func @transform_8(%arg0: i32) -> (i32, i32) {
    %c0_i32 = arith.constant 0 : i32
    %c0_i32_0 = arith.constant 0 : i32
    %c0_i32_1 = arith.constant 0 : i32
    return %c0_i32, %c0_i32_0 : i32, i32
  }
  func.func @transform_9(%arg0: i32) -> (i32, i32) {
    %c0_i32 = arith.constant 0 : i32
    %c0_i32_0 = arith.constant 0 : i32
    %c0_i32_1 = arith.constant 0 : i32
    return %c0_i32, %c0_i32_0 : i32, i32
  }
  func.func @transform_10(%arg0: i32) -> (i32, i32) {
    %c0_i32 = arith.constant 0 : i32
    %c0_i32_0 = arith.constant 0 : i32
    %c0_i32_1 = arith.constant 0 : i32
    return %c0_i32, %c0_i32_0 : i32, i32
  }
  func.func @transform_11(%arg0: i32) -> (i32, i32) {
    %c0_i32 = arith.constant 0 : i32
    %c0_i32_0 = arith.constant 0 : i32
    %c0_i32_1 = arith.constant 0 : i32
    return %c0_i32, %c0_i32_0 : i32, i32
  }
  func.func @transform_12(%arg0: i32) -> (i32, i32) {
    %c0_i32 = arith.constant 0 : i32
    %c0_i32_0 = arith.constant 0 : i32
    return %arg0, %c0_i32 : i32, i32
  }
}

</mosaic_0001>

<llo_original>
// kernel: tpu_custom_call.1
$region0: #{tpu_custom_call.1}
  #allocation0 [shape = 'u32[]', space=smem, size = 0x4, offset = 0x4, fixed_abs, tag = 'smem constant byte address 0x4 - core index']
  #allocation1 [shape = 'u32[144,128]{1,0:T(1,128)}', space=vmem, size = 0x12000, scoped, tag = 'internal scratch']
  %s0 = inlined_call_operand.vmem [shape: f32[32,256], index: 0, kind: input, shape index: {}]
  %s1 = inlined_call_operand.vmem [shape: bf16[256,64], index: 1, kind: input, shape index: {}]
  %s2 = inlined_call_operand.vmem [shape: f32[1,64], index: 2, kind: input, shape index: {}]
  %s3 = inlined_call_operand.vmem [shape: f32[1,64], index: 3, kind: input, shape index: {}]
  %s4 = inlined_call_operand.vmem [shape: bf16[3,64,64], index: 4, kind: input, shape index: {}]
  %s5 = inlined_call_operand.vmem [shape: f32[1,64], index: 5, kind: input, shape index: {}]
  %s6 = inlined_call_operand.vmem [shape: f32[1,64], index: 6, kind: input, shape index: {}]
  %s7 = inlined_call_operand.vmem [shape: bf16[64,256], index: 7, kind: input, shape index: {}]
  %s8 = inlined_call_operand.vmem [shape: f32[1,256], index: 8, kind: input, shape index: {}]
  %s9 = inlined_call_operand.vmem [shape: f32[1,256], index: 9, kind: input, shape index: {}]
  %s10 = inlined_call_operand.vmem [shape: f32[16,1], index: 10, kind: input, shape index: {}]
  %s11 = inlined_call_operand.vmem [shape: f32[16,1], index: 11, kind: input, shape index: {}]
  %s12 = inlined_call_operand.hbm [shape: f32[32,256], index: 12, kind: output, shape index: {}]
  %s13 = sld [smem:[#allocation0]]
  $region81: #{tpu_custom_call.1} parent=0
    _
  %s15 = ssub.s32 1, %s13
  %s16 = scalar_select 0, %s15, %s13
  $region1: #{tpu_custom_call.1} parent=0
    #allocation2 [shape = 'u8[32768]{0}', space=vmem, size = 0x8000, scoped, tag = 'output window, operand 0']
    #allocation3 [shape = 's32[2]{0}', space=sflag, size = 0x8, scoped, tag = 'scoped memory for tpu_custom_call.1']
    %17 = vsyncpa [#allocation3], 0
    %s18 = scalar_lea.sflag [#allocation3], 1
    %19 = vsyncpa %s18, 0
    loop: start=0, step=1, limit=4
    $region2: #{tpu_custom_call.1} parent=1 // loop_pre_header
      _
    $region3: #{tpu_custom_call.1} parent=1 // loop_header
      %s21 = sphi 0, %s25
      %p22 = scmp.ge.s32.totalorder %s21, 4
      %s31 = sphi 0, %s33
      %s34 = sphi 0, %s31
      %s35 = sphi 0, %s34
      %s51 = sphi 0, %s35
      %s55 = sphi 0, %s55
      %s57 = sphi 0, %s55
      %s58 = sphi 0, %s57
      %s72 = sphi 0, %s58
      %s76 = sphi 0, %s76
      %s78 = sphi 0, %s76
      %s79 = sphi 0, %s78
      %s93 = sphi 0, %s79
      %s97 = sphi 0, %s97
      %s99 = sphi 0, %s97
      %s100 = sphi 0, %s99
      %s114 = sphi 0, %s100
      %s118 = sphi 0, %s118
      %s120 = sphi 0, %s118
      %s121 = sphi 0, %s120
      %s135 = sphi 0, %s121
      %s139 = sphi 0, %s139
      %s141 = sphi 0, %s139
      %s142 = sphi 0, %s141
      %s156 = sphi 0, %s142
      %s160 = sphi 0, %s160
      %s162 = sphi 0, %s160
      %s163 = sphi 0, %s162
      %s177 = sphi 0, %s163
      %s181 = sphi 0, %s181
      %s183 = sphi 0, %s181
      %s184 = sphi 0, %s183
      %s198 = sphi 0, %s184
      %s202 = sphi 0, %s202
      %s204 = sphi 0, %s202
      %s205 = sphi 0, %s204
      %s219 = sphi 0, %s205
      %s223 = sphi 0, %s223
      %s225 = sphi 0, %s223
      %s226 = sphi 0, %s225
      %s240 = sphi 0, %s226
      %s244 = sphi 0, %s244
      %s246 = sphi 0, %s244
      %s247 = sphi 0, %s246
      %s261 = sphi 0, %s247
      %s265 = sphi 0, %s265
      %s267 = sphi 0, %s265
      %s268 = sphi 0, %s267
      %s282 = sphi 0, %s268
      %s288 = sphi 0, %s290
      %s291 = sphi 0, %s288
      %s292 = sphi 0, %s291
      %s308 = sphi 0, %s292
    $region4: #{tpu_custom_call.1} parent=1 // loop_header_branch
      %24 = sbr.rel (%p22) target = $region8
    $region5: #{tpu_custom_call.1} parent=1 // loop_body
      %s26 = ssub.s32 %s21, 1
      %s27 = ssub.s32 %s21, 2
      %s28 = sadd.s32 %s21, 1
      %s29 = ssub.s32 %s21, %s28
      %p30 = scmp.eq.s32.totalorder %s29, 0
      %s32 = sadd.s32 %s31, 1
      %s33 = scalar_select %p30, %s31, %s32
      %p36 = pneg %p30
      %p37 = scmp.eq.s32.totalorder %s21, 1
      %p38 = por %p36, %p37
      %p39 = scmp.ne.s32.totalorder %s31, %s34
      %p40 = scmp.eq.s32.totalorder %s21, 0
      %p41 = por %p39, %p40
      %p42 = scmp.ne.s32.totalorder %s31, %s34
      %p43 = scmp.eq.s32.totalorder %s26, 1
      %p44 = por %p42, %p43
      %p45 = scmp.ne.s32.totalorder %s34, %s35
      %p46 = scmp.eq.s32.totalorder %s26, 0
      %p47 = por %p45, %p46
      %p48 = scmp.ne.s32.totalorder %s34, %s35
      %p49 = scmp.eq.s32.totalorder %s27, 1
      %p50 = por %p48, %p49
      %p52 = scmp.ne.s32.totalorder %s35, %s51
      %p53 = scmp.eq.s32.totalorder %s27, 0
      %p54 = por %p52, %p53
      %s56 = sadd.s32 %s55, 1
      %p59 = scmp.eq.s32.totalorder %s21, 1
      %p60 = scmp.ne.s32.totalorder %s55, %s57
      %p61 = scmp.eq.s32.totalorder %s21, 0
      %p62 = por %p60, %p61
      %p63 = scmp.ne.s32.totalorder %s55, %s57
      %p64 = scmp.eq.s32.totalorder %s26, 1
      %p65 = por %p63, %p64
      %p66 = scmp.ne.s32.totalorder %s57, %s58
      %p67 = scmp.eq.s32.totalorder %s26, 0
      %p68 = por %p66, %p67
      %p69 = scmp.ne.s32.totalorder %s57, %s58
      %p70 = scmp.eq.s32.totalorder %s27, 1
      %p71 = por %p69, %p70
      %p73 = scmp.ne.s32.totalorder %s58, %s72
      %p74 = scmp.eq.s32.totalorder %s27, 0
      %p75 = por %p73, %p74
      %s77 = sadd.s32 %s76, 1
      %p80 = scmp.eq.s32.totalorder %s21, 1
      %p81 = scmp.ne.s32.totalorder %s76, %s78
      %p82 = scmp.eq.s32.totalorder %s21, 0
      %p83 = por %p81, %p82
      %p84 = scmp.ne.s32.totalorder %s76, %s78
      %p85 = scmp.eq.s32.totalorder %s26, 1
      %p86 = por %p84, %p85
      %p87 = scmp.ne.s32.totalorder %s78, %s79
      %p88 = scmp.eq.s32.totalorder %s26, 0
      %p89 = por %p87, %p88
      %p90 = scmp.ne.s32.totalorder %s78, %s79
      %p91 = scmp.eq.s32.totalorder %s27, 1
      %p92 = por %p90, %p91
      %p94 = scmp.ne.s32.totalorder %s79, %s93
      %p95 = scmp.eq.s32.totalorder %s27, 0
      %p96 = por %p94, %p95
      %s98 = sadd.s32 %s97, 1
      %p101 = scmp.eq.s32.totalorder %s21, 1
      %p102 = scmp.ne.s32.totalorder %s97, %s99
      %p103 = scmp.eq.s32.totalorder %s21, 0
      %p104 = por %p102, %p103
      %p105 = scmp.ne.s32.totalorder %s97, %s99
      %p106 = scmp.eq.s32.totalorder %s26, 1
      %p107 = por %p105, %p106
      %p108 = scmp.ne.s32.totalorder %s99, %s100
      %p109 = scmp.eq.s32.totalorder %s26, 0
      %p110 = por %p108, %p109
      %p111 = scmp.ne.s32.totalorder %s99, %s100
      %p112 = scmp.eq.s32.totalorder %s27, 1
      %p113 = por %p111, %p112
      %p115 = scmp.ne.s32.totalorder %s100, %s114
      %p116 = scmp.eq.s32.totalorder %s27, 0
      %p117 = por %p115, %p116
      %s119 = sadd.s32 %s118, 1
      %p122 = scmp.eq.s32.totalorder %s21, 1
      %p123 = scmp.ne.s32.totalorder %s118, %s120
      %p124 = scmp.eq.s32.totalorder %s21, 0
      %p125 = por %p123, %p124
      %p126 = scmp.ne.s32.totalorder %s118, %s120
      %p127 = scmp.eq.s32.totalorder %s26, 1
      %p128 = por %p126, %p127
      %p129 = scmp.ne.s32.totalorder %s120, %s121
      %p130 = scmp.eq.s32.totalorder %s26, 0
      %p131 = por %p129, %p130
      %p132 = scmp.ne.s32.totalorder %s120, %s121
      %p133 = scmp.eq.s32.totalorder %s27, 1
      %p134 = por %p132, %p133
      %p136 = scmp.ne.s32.totalorder %s121, %s135
      %p137 = scmp.eq.s32.totalorder %s27, 0
      %p138 = por %p136, %p137
      %s140 = sadd.s32 %s139, 1
      %p143 = scmp.eq.s32.totalorder %s21, 1
      %p144 = scmp.ne.s32.totalorder %s139, %s141
      %p145 = scmp.eq.s32.totalorder %s21, 0
      %p146 = por %p144, %p145
      %p147 = scmp.ne.s32.totalorder %s139, %s141
      %p148 = scmp.eq.s32.totalorder %s26, 1
      %p149 = por %p147, %p148
      %p150 = scmp.ne.s32.totalorder %s141, %s142
      %p151 = scmp.eq.s32.totalorder %s26, 0
      %p152 = por %p150, %p151
      %p153 = scmp.ne.s32.totalorder %s141, %s142
      %p154 = scmp.eq.s32.totalorder %s27, 1
      %p155 = por %p153, %p154
      %p157 = scmp.ne.s32.totalorder %s142, %s156
      %p158 = scmp.eq.s32.totalorder %s27, 0
      %p159 = por %p157, %p158
      %s161 = sadd.s32 %s160, 1
      %p164 = scmp.eq.s32.totalorder %s21, 1
      %p165 = scmp.ne.s32.totalorder %s160, %s162
      %p166 = scmp.eq.s32.totalorder %s21, 0
      %p167 = por %p165, %p166
      %p168 = scmp.ne.s32.totalorder %s160, %s162
      %p169 = scmp.eq.s32.totalorder %s26, 1
      %p170 = por %p168, %p169
      %p171 = scmp.ne.s32.totalorder %s162, %s163
      %p172 = scmp.eq.s32.totalorder %s26, 0
      %p173 = por %p171, %p172
      %p174 = scmp.ne.s32.totalorder %s162, %s163
      %p175 = scmp.eq.s32.totalorder %s27, 1
      %p176 = por %p174, %p175
      %p178 = scmp.ne.s32.totalorder %s163, %s177
      %p179 = scmp.eq.s32.totalorder %s27, 0
      %p180 = por %p178, %p179
      %s182 = sadd.s32 %s181, 1
      %p185 = scmp.eq.s32.totalorder %s21, 1
      %p186 = scmp.ne.s32.totalorder %s181, %s183
      %p187 = scmp.eq.s32.totalorder %s21, 0
      %p188 = por %p186, %p187
      %p189 = scmp.ne.s32.totalorder %s181, %s183
      %p190 = scmp.eq.s32.totalorder %s26, 1
      %p191 = por %p189, %p190
      %p192 = scmp.ne.s32.totalorder %s183, %s184
      %p193 = scmp.eq.s32.totalorder %s26, 0
      %p194 = por %p192, %p193
      %p195 = scmp.ne.s32.totalorder %s183, %s184
      %p196 = scmp.eq.s32.totalorder %s27, 1
      %p197 = por %p195, %p196
      %p199 = scmp.ne.s32.totalorder %s184, %s198
      %p200 = scmp.eq.s32.totalorder %s27, 0
      %p201 = por %p199, %p200
      %s203 = sadd.s32 %s202, 1
      %p206 = scmp.eq.s32.totalorder %s21, 1
      %p207 = scmp.ne.s32.totalorder %s202, %s204
      %p208 = scmp.eq.s32.totalorder %s21, 0
      %p209 = por %p207, %p208
      %p210 = scmp.ne.s32.totalorder %s202, %s204
      %p211 = scmp.eq.s32.totalorder %s26, 1
      %p212 = por %p210, %p211
      %p213 = scmp.ne.s32.totalorder %s204, %s205
      %p214 = scmp.eq.s32.totalorder %s26, 0
      %p215 = por %p213, %p214
      %p216 = scmp.ne.s32.totalorder %s204, %s205
      %p217 = scmp.eq.s32.totalorder %s27, 1
      %p218 = por %p216, %p217
      %p220 = scmp.ne.s32.totalorder %s205, %s219
      %p221 = scmp.eq.s32.totalorder %s27, 0
      %p222 = por %p220, %p221
      %s224 = sadd.s32 %s223, 1
      %p227 = scmp.eq.s32.totalorder %s21, 1
      %p228 = scmp.ne.s32.totalorder %s223, %s225
      %p229 = scmp.eq.s32.totalorder %s21, 0
      %p230 = por %p228, %p229
      %p231 = scmp.ne.s32.totalorder %s223, %s225
      %p232 = scmp.eq.s32.totalorder %s26, 1
      %p233 = por %p231, %p232
      %p234 = scmp.ne.s32.totalorder %s225, %s226
      %p235 = scmp.eq.s32.totalorder %s26, 0
      %p236 = por %p234, %p235
      %p237 = scmp.ne.s32.totalorder %s225, %s226
      %p238 = scmp.eq.s32.totalorder %s27, 1
      %p239 = por %p237, %p238
      %p241 = scmp.ne.s32.totalorder %s226, %s240
      %p242 = scmp.eq.s32.totalorder %s27, 0
      %p243 = por %p241, %p242
      %s245 = sadd.s32 %s244, 1
      %p248 = scmp.eq.s32.totalorder %s21, 1
      %p249 = scmp.ne.s32.totalorder %s244, %s246
      %p250 = scmp.eq.s32.totalorder %s21, 0
      %p251 = por %p249, %p250
      %p252 = scmp.ne.s32.totalorder %s244, %s246
      %p253 = scmp.eq.s32.totalorder %s26, 1
      %p254 = por %p252, %p253
      %p255 = scmp.ne.s32.totalorder %s246, %s247
      %p256 = scmp.eq.s32.totalorder %s26, 0
      %p257 = por %p255, %p256
      %p258 = scmp.ne.s32.totalorder %s246, %s247
      %p259 = scmp.eq.s32.totalorder %s27, 1
      %p260 = por %p258, %p259
      %p262 = scmp.ne.s32.totalorder %s247, %s261
      %p263 = scmp.eq.s32.totalorder %s27, 0
      %p264 = por %p262, %p263
      %s266 = sadd.s32 %s265, 1
      %p269 = scmp.eq.s32.totalorder %s21, 1
      %p270 = scmp.ne.s32.totalorder %s265, %s267
      %p271 = scmp.eq.s32.totalorder %s21, 0
      %p272 = por %p270, %p271
      %p273 = scmp.ne.s32.totalorder %s265, %s267
      %p274 = scmp.eq.s32.totalorder %s26, 1
      %p275 = por %p273, %p274
      %p276 = scmp.ne.s32.totalorder %s267, %s268
      %p277 = scmp.eq.s32.totalorder %s26, 0
      %p278 = por %p276, %p277
      %p279 = scmp.ne.s32.totalorder %s267, %s268
      %p280 = scmp.eq.s32.totalorder %s27, 1
      %p281 = por %p279, %p280
      %p283 = scmp.ne.s32.totalorder %s268, %s282
      %p284 = scmp.eq.s32.totalorder %s27, 0
      %p285 = por %p283, %p284
      %s286 = ssub.s32 %s21, %s28
      %p287 = scmp.eq.s32.totalorder %s286, 0
      %s289 = sadd.s32 %s288, 1
      %s290 = scalar_select %p287, %s288, %s289
      %p293 = pneg %p287
      %p294 = scmp.eq.s32.totalorder %s21, 1
      %p295 = por %p293, %p294
      %p296 = scmp.ne.s32.totalorder %s288, %s291
      %p297 = scmp.eq.s32.totalorder %s21, 0
      %p298 = por %p296, %p297
      %p299 = scmp.ne.s32.totalorder %s288, %s291
      %p300 = scmp.eq.s32.totalorder %s26, 1
      %p301 = por %p299, %p300
      %p302 = scmp.ne.s32.totalorder %s291, %s292
      %p303 = scmp.eq.s32.totalorder %s26, 0
      %p304 = por %p302, %p303
      %p305 = scmp.ne.s32.totalorder %s291, %s292
      %p306 = scmp.eq.s32.totalorder %s27, 1
      %p307 = por %p305, %p306
      %p309 = scmp.ne.s32.totalorder %s292, %s308
      %p310 = scmp.eq.s32.totalorder %s27, 0
      %p311 = por %p309, %p310
      %p312 = scmp.le.s32.totalorder 1, %s21
      %p313 = scmp.lt.s32.totalorder %s21, 3
      %p314 = pnand %p312, %p313
      %p315 = pneg %p314
      // Predicated region
      $region9: #{tpu_custom_call.1} parent=5 // pred_check
        _
      $region10: #{tpu_custom_call.1} parent=5 // pred_check_branch
        %317 = sbr.rel (%p314) target = $region12
      $region11: #{tpu_custom_call.1} parent=5 // pred_region
        %s318 = ssub.s32 %s21, 1
        // Predicated region
        $region13: #{tpu_custom_call.1} parent=11 // pred_check
          %p319 = pneg %p68
        $region14: #{tpu_custom_call.1} parent=11 // pred_check_branch
          %321 = sbr.rel (%p319) target = $region16
        $region15: #{tpu_custom_call.1} parent=11 // pred_region
          _
        $region16: #{tpu_custom_call.1} parent=11 // pred_fallthru
          _
        // Predicated region
        $region17: #{tpu_custom_call.1} parent=11 // pred_check
          %p322 = pneg %p89
        $region18: #{tpu_custom_call.1} parent=11 // pred_check_branch
          %324 = sbr.rel (%p322) target = $region20
        $region19: #{tpu_custom_call.1} parent=11 // pred_region
          _
        $region20: #{tpu_custom_call.1} parent=11 // pred_fallthru
          _
        // Predicated region
        $region21: #{tpu_custom_call.1} parent=11 // pred_check
          %p325 = pneg %p110
        $region22: #{tpu_custom_call.1} parent=11 // pred_check_branch
          %327 = sbr.rel (%p325) target = $region24
        $region23: #{tpu_custom_call.1} parent=11 // pred_region
          _
        $region24: #{tpu_custom_call.1} parent=11 // pred_fallthru
          _
        // Predicated region
        $region25: #{tpu_custom_call.1} parent=11 // pred_check
          %p328 = pneg %p131
        $region26: #{tpu_custom_call.1} parent=11 // pred_check_branch
          %330 = sbr.rel (%p328) target = $region28
        $region27: #{tpu_custom_call.1} parent=11 // pred_region
          _
        $region28: #{tpu_custom_call.1} parent=11 // pred_fallthru
          _
        // Predicated region
        $region29: #{tpu_custom_call.1} parent=11 // pred_check
          %p331 = pneg %p152
        $region30: #{tpu_custom_call.1} parent=11 // pred_check_branch
          %333 = sbr.rel (%p331) target = $region32
        $region31: #{tpu_custom_call.1} parent=11 // pred_region
          _
        $region32: #{tpu_custom_call.1} parent=11 // pred_fallthru
          _
        // Predicated region
        $region33: #{tpu_custom_call.1} parent=11 // pred_check
          %p334 = pneg %p173
        $region34: #{tpu_custom_call.1} parent=11 // pred_check_branch
          %336 = sbr.rel (%p334) target = $region36
        $region35: #{tpu_custom_call.1} parent=11 // pred_region
          _
        $region36: #{tpu_custom_call.1} parent=11 // pred_fallthru
          _
        // Predicated region
        $region37: #{tpu_custom_call.1} parent=11 // pred_check
          %p337 = pneg %p194
        $region38: #{tpu_custom_call.1} parent=11 // pred_check_branch
          %339 = sbr.rel (%p337) target = $region40
        $region39: #{tpu_custom_call.1} parent=11 // pred_region
          _
        $region40: #{tpu_custom_call.1} parent=11 // pred_fallthru
          _
        // Predicated region
        $region41: #{tpu_custom_call.1} parent=11 // pred_check
          %p340 = pneg %p215
        $region42: #{tpu_custom_call.1} parent=11 // pred_check_branch
          %342 = sbr.rel (%p340) target = $region44
        $region43: #{tpu_custom_call.1} parent=11 // pred_region
          _
        $region44: #{tpu_custom_call.1} parent=11 // pred_fallthru
          _
        // Predicated region
        $region45: #{tpu_custom_call.1} parent=11 // pred_check
          %p343 = pneg %p236
        $region46: #{tpu_custom_call.1} parent=11 // pred_check_branch
          %345 = sbr.rel (%p343) target = $region48
        $region47: #{tpu_custom_call.1} parent=11 // pred_region
          _
        $region48: #{tpu_custom_call.1} parent=11 // pred_fallthru
          _
        // Predicated region
        $region49: #{tpu_custom_call.1} parent=11 // pred_check
          %p346 = pneg %p257
        $region50: #{tpu_custom_call.1} parent=11 // pred_check_branch
          %348 = sbr.rel (%p346) target = $region52
        $region51: #{tpu_custom_call.1} parent=11 // pred_region
          _
        $region52: #{tpu_custom_call.1} parent=11 // pred_fallthru
          _
        // Predicated region
        $region53: #{tpu_custom_call.1} parent=11 // pred_check
          %p349 = pneg %p278
        $region54: #{tpu_custom_call.1} parent=11 // pred_check_branch
          %351 = sbr.rel (%p349) target = $region56
        $region55: #{tpu_custom_call.1} parent=11 // pred_region
          _
        $region56: #{tpu_custom_call.1} parent=11 // pred_fallthru
          _
      $region12: #{tpu_custom_call.1} parent=5 // pred_fallthru
        _
      %p352 = scmp.lt.s32.totalorder %s21, 2
      // Predicated region
      $region57: #{tpu_custom_call.1} parent=5 // pred_check
        %p353 = pneg %p352
      $region58: #{tpu_custom_call.1} parent=5 // pred_check_branch
        %355 = sbr.rel (%p353) target = $region60
      $region59: #{tpu_custom_call.1} parent=5 // pred_region
        // Predicated region
        $region61: #{tpu_custom_call.1} parent=59 // pred_check
          %p356 = pneg %p41
        $region62: #{tpu_custom_call.1} parent=59 // pred_check_branch
          %358 = sbr.rel (%p356) target = $region64
        $region63: #{tpu_custom_call.1} parent=59 // pred_region
          %s359 = smul.u32 2, %s21
          %p360 = scmp.lt.s32.totalorder %s359, 3
          %s361 = scalar_select %p360, %s359, 3
          %s362 = smul.addr %s361, 2
          %s363 = smul.addr %s362, 8
          %s364 = scalar_lea.vmem %s0, %s363
          %s365 = smul.u32 2, %s21
        $region64: #{tpu_custom_call.1} parent=59 // pred_fallthru
          _
      $region60: #{tpu_custom_call.1} parent=5 // pred_fallthru
        _
      %p366 = scmp.le.s32.totalorder 1, %s21
      %p367 = scmp.lt.s32.totalorder %s21, 3
      %p368 = pnand %p366, %p367
      %p369 = pneg %p368
      // Predicated region
      $region65: #{tpu_custom_call.1} parent=5 // pred_check
        _
      $region66: #{tpu_custom_call.1} parent=5 // pred_check_branch
        %371 = sbr.rel (%p368) target = $region68
      $region67: #{tpu_custom_call.1} parent=5 // pred_region
        %s372 = ssub.s32 %s21, 1
        %s373 = smul.u32 2, %s26
        %p374 = scmp.lt.s32.totalorder %s373, 3
        %s375 = scalar_select %p374, %s373, 3
        %s376 = smul.addr %s375, 2
        %s377 = smul.addr %s376, 8
        %s378 = scalar_lea.vmem %s0, %s377
        %p379 = pneg %p47
        %p380 = pneg %p44
        %p381 = pneg %p68
        %p382 = pneg %p65
        %p383 = pneg %p89
        %p384 = pneg %p86
        %p385 = pneg %p110
        %p386 = pneg %p107
        %p387 = pneg %p131
        %p388 = pneg %p128
        %p389 = pneg %p152
        %p390 = pneg %p149
        %p391 = pneg %p173
        %p392 = pneg %p170
        %p393 = pneg %p194
        %p394 = pneg %p191
        %p395 = pneg %p215
        %p396 = pneg %p212
        %p397 = pneg %p236
        %p398 = pneg %p233
        %p399 = pneg %p257
        %p400 = pneg %p254
        %p401 = pneg %p278
        %p402 = pneg %p275
        %p403 = pneg %p304
        %p404 = pneg %p301
        %s405 = sand.u32 %s291, 1
        %s406 = scalar_lea.sflag [#allocation3], %s405
        %s407 = sand.u32 %s291, 1
        %s408 = smul.addr %s407, 32
        %s409 = scalar_lea.vmem [#allocation2], %s408
        %s410 = smul.u32 2, %s26
        %p411 = scmp.lt.s32.totalorder %s410, 3
        %s412 = scalar_select %p411, %s410, 3
        %s413 = smul.addr %s412, 2
        %s414 = smul.addr %s413, 8
        %s415 = scalar_lea.vmem %s0, %s414
        %s416 = smul.u32 2, %s26
        %s417 = smul.u32 2, %s26
        %v419 = vld [vmem:[%s415] sm:$0xff]
        %v420 = vld [vmem:[%s415 + $0x8] sm:$0xff]
        %v421 = vld [vmem:[%s415 + $0x10] sm:$0xff]
        %v422 = vld [vmem:[%s415 + $0x18] sm:$0xff]
        %v423 = vpack.c.bf16 %v421, %v419
        %v424 = vpack.c.bf16 %v422, %v420
        %v425 = vld [vmem:[%s1] sm:$0xf]
        %v426 = vld [vmem:[%s1 + $0x4] sm:$0xf]
        %v427 = vld [vmem:[%s1 + $0x8] sm:$0xf]
        %v428 = vld [vmem:[%s1 + $0xc] sm:$0xf]
        %v429 = vld [vmem:[%s1 + $0x10] sm:$0xf]
        %v430 = vld [vmem:[%s1 + $0x14] sm:$0xf]
        %v431 = vld [vmem:[%s1 + $0x18] sm:$0xf]
        %v432 = vld [vmem:[%s1 + $0x1c] sm:$0xf]
        %v433 = vld [vmem:[%s1 + $0x20] sm:$0xf]
        %v434 = vld [vmem:[%s1 + $0x24] sm:$0xf]
        %v435 = vld [vmem:[%s1 + $0x28] sm:$0xf]
        %v436 = vld [vmem:[%s1 + $0x2c] sm:$0xf]
        %v437 = vld [vmem:[%s1 + $0x30] sm:$0xf]
        %v438 = vld [vmem:[%s1 + $0x34] sm:$0xf]
        %v439 = vld [vmem:[%s1 + $0x38] sm:$0xf]
        %v440 = vld [vmem:[%s1 + $0x3c] sm:$0xf]
        %v441 = vld [vmem:[%s1 + $0x40] sm:$0xf]
        %v442 = vld [vmem:[%s1 + $0x44] sm:$0xf]
        %v443 = vld [vmem:[%s1 + $0x48] sm:$0xf]
        %v444 = vld [vmem:[%s1 + $0x4c] sm:$0xf]
        %v445 = vld [vmem:[%s1 + $0x50] sm:$0xf]
        %v446 = vld [vmem:[%s1 + $0x54] sm:$0xf]
        %v447 = vld [vmem:[%s1 + $0x58] sm:$0xf]
        %v448 = vld [vmem:[%s1 + $0x5c] sm:$0xf]
        %v449 = vld [vmem:[%s1 + $0x60] sm:$0xf]
        %v450 = vld [vmem:[%s1 + $0x64] sm:$0xf]
        %v451 = vld [vmem:[%s1 + $0x68] sm:$0xf]
        %v452 = vld [vmem:[%s1 + $0x6c] sm:$0xf]
        %v453 = vld [vmem:[%s1 + $0x70] sm:$0xf]
        %v454 = vld [vmem:[%s1 + $0x74] sm:$0xf]
        %v455 = vld [vmem:[%s1 + $0x78] sm:$0xf]
        %v456 = vld [vmem:[%s1 + $0x7c] sm:$0xf]
        %v489 = vunpack.c.l.b16 %v425
        %v490 = vunpack.c.l.b16 %v426
        %v491 = vunpack.c.l.b16 %v427
        %v492 = vunpack.c.l.b16 %v428
        %v493 = vunpack.c.l.b16 %v429
        %v494 = vunpack.c.l.b16 %v430
        %v495 = vunpack.c.l.b16 %v431
        %v496 = vunpack.c.l.b16 %v432
        %v497 = vunpack.c.l.b16 %v433
        %v498 = vunpack.c.l.b16 %v434
        %v499 = vunpack.c.l.b16 %v435
        %v500 = vunpack.c.l.b16 %v436
        %v501 = vunpack.c.l.b16 %v437
        %v502 = vunpack.c.l.b16 %v438
        %v503 = vunpack.c.l.b16 %v439
        %v504 = vunpack.c.l.b16 %v440
        %v505 = vunpack.c.l.b16 %v441
        %v506 = vunpack.c.l.b16 %v442
        %v507 = vunpack.c.l.b16 %v443
        %v508 = vunpack.c.l.b16 %v444
        %v509 = vunpack.c.l.b16 %v445
        %v510 = vunpack.c.l.b16 %v446
        %v511 = vunpack.c.l.b16 %v447
        %v512 = vunpack.c.l.b16 %v448
        %v513 = vunpack.c.l.b16 %v449
        %v514 = vunpack.c.l.b16 %v450
        %v515 = vunpack.c.l.b16 %v451
        %v516 = vunpack.c.l.b16 %v452
        %v517 = vunpack.c.l.b16 %v453
        %v518 = vunpack.c.l.b16 %v454
        %v519 = vunpack.c.l.b16 %v455
        %v520 = vunpack.c.l.b16 %v456
        %v521 = vpack.c.b16 %v490, %v489
        %v522 = vpack.c.b16 %v492, %v491
        %v523 = vpack.c.b16 %v494, %v493
        %v524 = vpack.c.b16 %v496, %v495
        %v525 = vpack.c.b16 %v498, %v497
        %v526 = vpack.c.b16 %v500, %v499
        %v527 = vpack.c.b16 %v502, %v501
        %v528 = vpack.c.b16 %v504, %v503
        %v529 = vpack.c.b16 %v506, %v505
        %v530 = vpack.c.b16 %v508, %v507
        %v531 = vpack.c.b16 %v510, %v509
        %v532 = vpack.c.b16 %v512, %v511
        %v533 = vpack.c.b16 %v514, %v513
        %v534 = vpack.c.b16 %v516, %v515
        %v535 = vpack.c.b16 %v518, %v517
        %v536 = vpack.c.b16 %v520, %v519
        %553 = vmatprep.subr.bf16.mxu0 0
        %554 = vmatpush1.bf16.msra.mxu0 %v521
        %555 = vmatprep.subr.bf16.mxu0 0
        %556 = vmatpush1.bf16.msra.mxu0 %v522
        %557 = vmatprep.subr.bf16.mxu0 0
        %558 = vmatpush1.bf16.msra.mxu0 %v523
        %559 = vmatprep.subr.bf16.mxu0 0
        %560 = vmatpush1.bf16.msra.mxu0 %v524
        %561 = vmatprep.subr.bf16.mxu0 0
        %562 = vmatpush1.bf16.msra.mxu0 %v525
        %563 = vmatprep.subr.bf16.mxu0 0
        %564 = vmatpush1.bf16.msra.mxu0 %v526
        %565 = vmatprep.subr.bf16.mxu0 0
        %566 = vmatpush1.bf16.msra.mxu0 %v527
        %567 = vmatprep.subr.bf16.mxu0 0
        %568 = vmatpush1.bf16.msra.mxu0 %v528
        %569 = vmatprep.subr.bf16.mxu0 0
        %570 = vmatpush1.bf16.msra.mxu0 %v529
        %571 = vmatprep.subr.bf16.mxu0 0
        %572 = vmatpush1.bf16.msra.mxu0 %v530
        %573 = vmatprep.subr.bf16.mxu0 0
        %574 = vmatpush1.bf16.msra.mxu0 %v531
        %575 = vmatprep.subr.bf16.mxu0 0
        %576 = vmatpush1.bf16.msra.mxu0 %v532
        %577 = vmatprep.subr.bf16.mxu0 0
        %578 = vmatpush1.bf16.msra.mxu0 %v533
        %579 = vmatprep.subr.bf16.mxu0 0
        %580 = vmatpush1.bf16.msra.mxu0 %v534
        %581 = vmatprep.subr.bf16.mxu0 0
        %582 = vmatpush1.bf16.msra.mxu0 %v535
        %583 = vmatprep.subr.bf16.mxu0 0
        %584 = vmatpush1.bf16.msra.mxu0 %v536
        %585 = vmatprep.mubr.bf16.mxu0 %v424
        %586 = vmatmul.mubr.bf16.gmra.mrb[0].mxu0 %v423
        %v587 = vpop.f32.mrb[0].mxu0
        %v588 = vadd.f32 0.0, %v587
        %v589 = vpop.f32.mrb[0].mxu0
        %v590 = vpop.f32.mrb[0].mxu0
        %v591 = vadd.f32 0.0, %v590
        %v592 = vpop.f32.mrb[0].mxu0
        %593 = vdwg.mxu0
        %v594 = vld [vmem:[%s2] sm:$0x1]
        %v596 = vlaneseq
        %v597 = vshrl.u32 %v596, 7
        %v598 = vsub.s32 0, %v597
        %v599 = vrot.slane %v594, %v598
        %v601 = vmul.f32 %v588, %v599
        %v602 = vmul.f32 %v591, %v599
        %v603 = vld [vmem:[%s3] sm:$0x1]
        %v605 = vlaneseq
        %v606 = vshrl.u32 %v605, 7
        %v607 = vsub.s32 0, %v606
        %v608 = vrot.slane %v603, %v607
        %v610 = vadd.f32 %v601, %v608
        %v611 = vadd.f32 %v602, %v608
        %v612 = vmax.f32 %v610, 0.0
        %v613 = vmax.f32 %v611, 0.0
        %v614 = vrot.slane %v612, 1
        %v615 = vrot.slane %v613, 1
        %v616 = vlaneseq
        %v617 = vshrl.u32 %v616, 7
        %vm618 = vcmp.lt.s32.totalorder %v617, 7
        %v619 = vsel %vm618, %v614, %v615
        %v620 = vsel %vm618, %v615, %v614
        %v621 = vld [vmem:[%s10] sm:$0xff]
        %v622 = vld [vmem:[%s10 + $0x8] sm:$0xff]
        %624 = vset.pattern.permute.xlu0 0
        %625 = vperm.xlu0 %624, %v621
        %v626 = vpop.permute.xlu0 %625
        %629 = vset.pattern.permute.xlu0 0
        %630 = vperm.xlu0 %629, %v622
        %v631 = vpop.permute.xlu0 %630
        %v633 = vmul.f32 %v619, %v626
        %v634 = vmul.f32 %v620, %v631
        %v635 = vrot.slane %v612, 7
        %v636 = vrot.slane %v613, 7
        %vm637 = vcmp.lt.s32.totalorder %v617, 1
        %v638 = vsel %vm637, %v635, %v636
        %v639 = vsel %vm637, %v636, %v635
        %v640 = vld [vmem:[%s11] sm:$0xff]
        %v641 = vld [vmem:[%s11 + $0x8] sm:$0xff]
        %643 = vset.pattern.permute.xlu0 0
        %644 = vperm.xlu0 %643, %v640
        %v645 = vpop.permute.xlu0 %644
        %648 = vset.pattern.permute.xlu0 0
        %649 = vperm.xlu0 %648, %v641
        %v650 = vpop.permute.xlu0 %649
        %v652 = vmul.f32 %v639, %v645
        %v653 = vmul.f32 %v638, %v650
        %v654 = vpack.c.bf16 %v653, %v652
        %v655 = vld [vmem:[%s4] sm:$0xf]
        %v656 = vld [vmem:[%s4 + $0x4] sm:$0xf]
        %v657 = vld [vmem:[%s4 + $0x8] sm:$0xf]
        %v658 = vld [vmem:[%s4 + $0xc] sm:$0xf]
        %v659 = vld [vmem:[%s4 + $0x10] sm:$0xf]
        %v660 = vld [vmem:[%s4 + $0x14] sm:$0xf]
        %v661 = vld [vmem:[%s4 + $0x18] sm:$0xf]
        %v662 = vld [vmem:[%s4 + $0x1c] sm:$0xf]
        %v663 = vpack.c.bf16 %v613, %v612
        %s664 = scalar_lea.vmem %s4, 32
        %v665 = vld [vmem:[%s664] sm:$0xf]
        %v666 = vld [vmem:[%s664 + $0x4] sm:$0xf]
        %v667 = vld [vmem:[%s664 + $0x8] sm:$0xf]
        %v668 = vld [vmem:[%s664 + $0xc] sm:$0xf]
        %v669 = vld [vmem:[%s664 + $0x10] sm:$0xf]
        %v670 = vld [vmem:[%s664 + $0x14] sm:$0xf]
        %v671 = vld [vmem:[%s664 + $0x18] sm:$0xf]
        %v672 = vld [vmem:[%s664 + $0x1c] sm:$0xf]
        %v681 = vunpack.c.l.b16 %v665
        %v682 = vunpack.c.l.b16 %v666
        %v683 = vunpack.c.l.b16 %v667
        %v684 = vunpack.c.l.b16 %v668
        %v685 = vunpack.c.l.b16 %v669
        %v686 = vunpack.c.l.b16 %v670
        %v687 = vunpack.c.l.b16 %v671
        %v688 = vunpack.c.l.b16 %v672
        %v689 = vpack.c.b16 %v682, %v681
        %v690 = vpack.c.b16 %v684, %v683
        %v691 = vpack.c.b16 %v686, %v685
        %v692 = vpack.c.b16 %v688, %v687
        %vm697 = vcmask 523264
        %v699 = vsel %vm697, %v663, 0
        %701 = vmatprep.subr.bf16.mxu0 0
        %702 = vmatpush1.bf16.msra.mxu0 %v689
        %703 = vmatprep.subr.bf16.mxu0 0
        %704 = vmatpush1.bf16.msra.mxu0 %v690
        %705 = vmatprep.subr.bf16.mxu0 0
        %706 = vmatpush1.bf16.msra.mxu0 %v691
        %707 = vmatprep.subr.bf16.mxu0 0
        %708 = vmatpush1.bf16.msra.mxu0 %v692
        %709 = vmatprep.subr.bf16.mxu0 0
        %710 = vmatpush1.bf16.msra.mxu0 0
        %711 = vmatprep.subr.bf16.mxu0 0
        %712 = vmatpush1.bf16.msra.mxu0 0
        %713 = vmatprep.subr.bf16.mxu0 0
        %714 = vmatpush1.bf16.msra.mxu0 0
        %715 = vmatprep.subr.bf16.mxu0 0
        %716 = vmatpush1.bf16.msra.mxu0 0
        %717 = vmatprep.subr.bf16.mxu0 0
        %718 = vmatpush1.bf16.msra.mxu0 0
        %719 = vmatprep.subr.bf16.mxu0 0
        %720 = vmatpush1.bf16.msra.mxu0 0
        %721 = vmatprep.subr.bf16.mxu0 0
        %722 = vmatpush1.bf16.msra.mxu0 0
        %723 = vmatprep.subr.bf16.mxu0 0
        %724 = vmatpush1.bf16.msra.mxu0 0
        %725 = vmatprep.subr.bf16.mxu0 0
        %726 = vmatpush1.bf16.msra.mxu0 0
        %727 = vmatprep.subr.bf16.mxu0 0
        %728 = vmatpush1.bf16.msra.mxu0 0
        %729 = vmatprep.subr.bf16.mxu0 0
        %730 = vmatpush1.bf16.msra.mxu0 0
        %731 = vmatprep.subr.bf16.mxu0 0
        %732 = vmatpush1.bf16.msra.mxu0 0
        %733 = vmatprep.mubr.bf16.mxu0 0
        %734 = vmatmul.mubr.bf16.gmra.mrb[0].mxu0 %v699
        %v735 = vpop.f32.mrb[0].mxu0
        %v736 = vadd.f32 0.0, %v735
        %v737 = vpop.f32.mrb[0].mxu0
        %v738 = vpop.f32.mrb[0].mxu0
        %v739 = vadd.f32 0.0, %v738
        %v740 = vpop.f32.mrb[0].mxu0
        %741 = vdwg.mxu0
        %v750 = vunpack.c.l.b16 %v655
        %v751 = vunpack.c.l.b16 %v656
        %v752 = vunpack.c.l.b16 %v657
        %v753 = vunpack.c.l.b16 %v658
        %v754 = vunpack.c.l.b16 %v659
        %v755 = vunpack.c.l.b16 %v660
        %v756 = vunpack.c.l.b16 %v661
        %v757 = vunpack.c.l.b16 %v662
        %v758 = vpack.c.b16 %v751, %v750
        %v759 = vpack.c.b16 %v753, %v752
        %v760 = vpack.c.b16 %v755, %v754
        %v761 = vpack.c.b16 %v757, %v756
        %v767 = vsel %vm697, %v654, 0
        %769 = vmatprep.subr.bf16.mxu0 0
        %770 = vmatpush1.bf16.msra.mxu0 %v758
        %771 = vmatprep.subr.bf16.mxu0 0
        %772 = vmatpush1.bf16.msra.mxu0 %v759
        %773 = vmatprep.subr.bf16.mxu0 0
        %774 = vmatpush1.bf16.msra.mxu0 %v760
        %775 = vmatprep.subr.bf16.mxu0 0
        %776 = vmatpush1.bf16.msra.mxu0 %v761
        %777 = vmatprep.subr.bf16.mxu0 0
        %778 = vmatpush1.bf16.msra.mxu0 0
        %779 = vmatprep.subr.bf16.mxu0 0
        %780 = vmatpush1.bf16.msra.mxu0 0
        %781 = vmatprep.subr.bf16.mxu0 0
        %782 = vmatpush1.bf16.msra.mxu0 0
        %783 = vmatprep.subr.bf16.mxu0 0
        %784 = vmatpush1.bf16.msra.mxu0 0
        %785 = vmatprep.subr.bf16.mxu0 0
        %786 = vmatpush1.bf16.msra.mxu0 0
        %787 = vmatprep.subr.bf16.mxu0 0
        %788 = vmatpush1.bf16.msra.mxu0 0
        %789 = vmatprep.subr.bf16.mxu0 0
        %790 = vmatpush1.bf16.msra.mxu0 0
        %791 = vmatprep.subr.bf16.mxu0 0
        %792 = vmatpush1.bf16.msra.mxu0 0
        %793 = vmatprep.subr.bf16.mxu0 0
        %794 = vmatpush1.bf16.msra.mxu0 0
        %795 = vmatprep.subr.bf16.mxu0 0
        %796 = vmatpush1.bf16.msra.mxu0 0
        %797 = vmatprep.subr.bf16.mxu0 0
        %798 = vmatpush1.bf16.msra.mxu0 0
        %799 = vmatprep.subr.bf16.mxu0 0
        %800 = vmatpush1.bf16.msra.mxu0 0
        %801 = vmatprep.mubr.bf16.mxu0 0
        %802 = vmatmul.mubr.bf16.gmra.mrb[0].mxu0 %v767
        %v803 = vpop.f32.mrb[0].mxu0
        %v804 = vadd.f32 %v736, %v803
        %v805 = vpop.f32.mrb[0].mxu0
        %v806 = vpop.f32.mrb[0].mxu0
        %v807 = vadd.f32 %v739, %v806
        %v808 = vpop.f32.mrb[0].mxu0
        %809 = vdwg.mxu0
        %v810 = vpack.c.bf16 %v634, %v633
        %s811 = scalar_lea.vmem %s4, 64
        %v812 = vld [vmem:[%s811] sm:$0xf]
        %v813 = vld [vmem:[%s811 + $0x4] sm:$0xf]
        %v814 = vld [vmem:[%s811 + $0x8] sm:$0xf]
        %v815 = vld [vmem:[%s811 + $0xc] sm:$0xf]
        %v816 = vld [vmem:[%s811 + $0x10] sm:$0xf]
        %v817 = vld [vmem:[%s811 + $0x14] sm:$0xf]
        %v818 = vld [vmem:[%s811 + $0x18] sm:$0xf]
        %v819 = vld [vmem:[%s811 + $0x1c] sm:$0xf]
        %v828 = vunpack.c.l.b16 %v812
        %v829 = vunpack.c.l.b16 %v813
        %v830 = vunpack.c.l.b16 %v814
        %v831 = vunpack.c.l.b16 %v815
        %v832 = vunpack.c.l.b16 %v816
        %v833 = vunpack.c.l.b16 %v817
        %v834 = vunpack.c.l.b16 %v818
        %v835 = vunpack.c.l.b16 %v819
        %v836 = vpack.c.b16 %v829, %v828
        %v837 = vpack.c.b16 %v831, %v830
        %v838 = vpack.c.b16 %v833, %v832
        %v839 = vpack.c.b16 %v835, %v834
        %v845 = vsel %vm697, %v810, 0
        %847 = vmatprep.subr.bf16.mxu0 0
        %848 = vmatpush1.bf16.msra.mxu0 %v836
        %849 = vmatprep.subr.bf16.mxu0 0
        %850 = vmatpush1.bf16.msra.mxu0 %v837
        %851 = vmatprep.subr.bf16.mxu0 0
        %852 = vmatpush1.bf16.msra.mxu0 %v838
        %853 = vmatprep.subr.bf16.mxu0 0
        %854 = vmatpush1.bf16.msra.mxu0 %v839
        %855 = vmatprep.subr.bf16.mxu0 0
        %856 = vmatpush1.bf16.msra.mxu0 0
        %857 = vmatprep.subr.bf16.mxu0 0
        %858 = vmatpush1.bf16.msra.mxu0 0
        %859 = vmatprep.subr.bf16.mxu0 0
        %860 = vmatpush1.bf16.msra.mxu0 0
        %861 = vmatprep.subr.bf16.mxu0 0
        %862 = vmatpush1.bf16.msra.mxu0 0
        %863 = vmatprep.subr.bf16.mxu0 0
        %864 = vmatpush1.bf16.msra.mxu0 0
        %865 = vmatprep.subr.bf16.mxu0 0
        %866 = vmatpush1.bf16.msra.mxu0 0
        %867 = vmatprep.subr.bf16.mxu0 0
        %868 = vmatpush1.bf16.msra.mxu0 0
        %869 = vmatprep.subr.bf16.mxu0 0
        %870 = vmatpush1.bf16.msra.mxu0 0
        %871 = vmatprep.subr.bf16.mxu0 0
        %872 = vmatpush1.bf16.msra.mxu0 0
        %873 = vmatprep.subr.bf16.mxu0 0
        %874 = vmatpush1.bf16.msra.mxu0 0
        %875 = vmatprep.subr.bf16.mxu0 0
        %876 = vmatpush1.bf16.msra.mxu0 0
        %877 = vmatprep.subr.bf16.mxu0 0
        %878 = vmatpush1.bf16.msra.mxu0 0
        %879 = vmatprep.mubr.bf16.mxu0 0
        %880 = vmatmul.mubr.bf16.gmra.mrb[0].mxu0 %v845
        %v881 = vpop.f32.mrb[0].mxu0
        %v882 = vadd.f32 0.0, %v881
        %v883 = vpop.f32.mrb[0].mxu0
        %v884 = vpop.f32.mrb[0].mxu0
        %v885 = vadd.f32 0.0, %v884
        %v886 = vpop.f32.mrb[0].mxu0
        %887 = vdwg.mxu0
        %v888 = vadd.f32 %v804, %v882
        %v889 = vadd.f32 %v807, %v885
        %v890 = vld [vmem:[%s5] sm:$0x1]
        %v892 = vlaneseq
        %v893 = vshrl.u32 %v892, 7
        %v894 = vsub.s32 0, %v893
        %v895 = vrot.slane %v890, %v894
        %v897 = vmul.f32 %v888, %v895
        %v898 = vmul.f32 %v889, %v895
        %v899 = vld [vmem:[%s6] sm:$0x1]
        %v901 = vlaneseq
        %v902 = vshrl.u32 %v901, 7
        %v903 = vsub.s32 0, %v902
        %v904 = vrot.slane %v899, %v903
        %v906 = vadd.f32 %v897, %v904
        %v907 = vadd.f32 %v898, %v904
        %v908 = vmax.f32 %v906, 0.0
        %v909 = vmax.f32 %v907, 0.0
        %v910 = vpack.c.bf16 %v909, %v908
        %v911 = vld [vmem:[%s7] sm:$0xff]
        %v912 = vld [vmem:[%s7 + $0x8] sm:$0xff]
        %v913 = vld [vmem:[%s7 + $0x10] sm:$0xff]
        %v914 = vld [vmem:[%s7 + $0x18] sm:$0xff]
        %v915 = vld [vmem:[%s7 + $0x20] sm:$0xff]
        %v916 = vld [vmem:[%s7 + $0x28] sm:$0xff]
        %v917 = vld [vmem:[%s7 + $0x30] sm:$0xff]
        %v918 = vld [vmem:[%s7 + $0x38] sm:$0xff]
        %v927 = vunpack.c.l.b16 %v911
        %v928 = vunpack.c.h.b16 %v911
        %v929 = vunpack.c.l.b16 %v912
        %v930 = vunpack.c.h.b16 %v912
        %v931 = vunpack.c.l.b16 %v913
        %v932 = vunpack.c.h.b16 %v913
        %v933 = vunpack.c.l.b16 %v914
        %v934 = vunpack.c.h.b16 %v914
        %v935 = vunpack.c.l.b16 %v915
        %v936 = vunpack.c.h.b16 %v915
        %v937 = vunpack.c.l.b16 %v916
        %v938 = vunpack.c.h.b16 %v916
        %v939 = vunpack.c.l.b16 %v917
        %v940 = vunpack.c.h.b16 %v917
        %v941 = vunpack.c.l.b16 %v918
        %v942 = vunpack.c.h.b16 %v918
        %v943 = vpack.c.b16 %v929, %v927
        %v944 = vpack.c.b16 %v930, %v928
        %v945 = vpack.c.b16 %v933, %v931
        %v946 = vpack.c.b16 %v934, %v932
        %v947 = vpack.c.b16 %v937, %v935
        %v948 = vpack.c.b16 %v938, %v936
        %v949 = vpack.c.b16 %v941, %v939
        %v950 = vpack.c.b16 %v942, %v940
        %v960 = vsel %vm697, %v910, 0
        %962 = vmatprep.subr.bf16.mxu0 %v944
        %963 = vmatpush1.bf16.msra.mxu0 %v943
        %964 = vmatprep.subr.bf16.mxu0 %v946
        %965 = vmatpush1.bf16.msra.mxu0 %v945
        %966 = vmatprep.subr.bf16.mxu0 %v948
        %967 = vmatpush1.bf16.msra.mxu0 %v947
        %968 = vmatprep.subr.bf16.mxu0 %v950
        %969 = vmatpush1.bf16.msra.mxu0 %v949
        %970 = vmatprep.subr.bf16.mxu0 0
        %971 = vmatpush1.bf16.msra.mxu0 0
        %972 = vmatprep.subr.bf16.mxu0 0
        %973 = vmatpush1.bf16.msra.mxu0 0
        %974 = vmatprep.subr.bf16.mxu0 0
        %975 = vmatpush1.bf16.msra.mxu0 0
        %976 = vmatprep.subr.bf16.mxu0 0
        %977 = vmatpush1.bf16.msra.mxu0 0
        %978 = vmatprep.subr.bf16.mxu0 0
        %979 = vmatpush1.bf16.msra.mxu0 0
        %980 = vmatprep.subr.bf16.mxu0 0
        %981 = vmatpush1.bf16.msra.mxu0 0
        %982 = vmatprep.subr.bf16.mxu0 0
        %983 = vmatpush1.bf16.msra.mxu0 0
        %984 = vmatprep.subr.bf16.mxu0 0
        %985 = vmatpush1.bf16.msra.mxu0 0
        %986 = vmatprep.subr.bf16.mxu0 0
        %987 = vmatpush1.bf16.msra.mxu0 0
        %988 = vmatprep.subr.bf16.mxu0 0
        %989 = vmatpush1.bf16.msra.mxu0 0
        %990 = vmatprep.subr.bf16.mxu0 0
        %991 = vmatpush1.bf16.msra.mxu0 0
        %992 = vmatprep.subr.bf16.mxu0 0
        %993 = vmatpush1.bf16.msra.mxu0 0
        %994 = vmatprep.mubr.bf16.mxu0 0
        %995 = vmatmul.mubr.bf16.gmra.mrb[0].mxu0 %v960
        %v996 = vpop.f32.mrb[0].mxu0
        %v997 = vadd.f32 0.0, %v996
        %v998 = vpop.f32.mrb[0].mxu0
        %v999 = vadd.f32 0.0, %v998
        %v1000 = vpop.f32.mrb[0].mxu0
        %v1001 = vadd.f32 0.0, %v1000
        %v1002 = vpop.f32.mrb[0].mxu0
        %v1003 = vadd.f32 0.0, %v1002
        %1004 = vdwg.mxu0
        %v1005 = vld [vmem:[%s8] sm:$0x3]
        %v1007 = vlaneseq
        %v1008 = vshrl.u32 %v1007, 7
        %v1009 = vsub.s32 0, %v1008
        %v1010 = vrot.slane %v1005, %v1009
        %v1011 = vlaneseq
        %v1012 = vshrl.u32 %v1011, 7
        %v1013 = vsub.s32 1, %v1012
        %v1014 = vrot.slane %v1005, %v1013
        %v1017 = vmul.f32 %v997, %v1010
        %v1018 = vmul.f32 %v999, %v1014
        %v1019 = vmul.f32 %v1001, %v1010
        %v1020 = vmul.f32 %v1003, %v1014
        %v1021 = vld [vmem:[%s9] sm:$0x3]
        %v1023 = vlaneseq
        %v1024 = vshrl.u32 %v1023, 7
        %v1025 = vsub.s32 0, %v1024
        %v1026 = vrot.slane %v1021, %v1025
        %v1027 = vlaneseq
        %v1028 = vshrl.u32 %v1027, 7
        %v1029 = vsub.s32 1, %v1028
        %v1030 = vrot.slane %v1021, %v1029
        %v1033 = vadd.f32 %v1017, %v1026
        %v1034 = vadd.f32 %v1018, %v1030
        %v1035 = vadd.f32 %v1019, %v1026
        %v1036 = vadd.f32 %v1020, %v1030
        %v1037 = vadd.f32 %v1033, %v419
        %v1038 = vadd.f32 %v1034, %v420
        %v1039 = vadd.f32 %v1035, %v421
        %v1040 = vadd.f32 %v1036, %v422
        %v1041 = vmax.f32 %v1037, 0.0
        %v1042 = vmax.f32 %v1038, 0.0
        %v1043 = vmax.f32 %v1039, 0.0
        %v1044 = vmax.f32 %v1040, 0.0
        %1045 = vst [vmem:[%s409] sm:$0xff] %v1041
        %1046 = vst [vmem:[%s409 + $0x8] sm:$0xff] %v1042
        %1047 = vst [vmem:[%s409 + $0x10] sm:$0xff] %v1043
        %1048 = vst [vmem:[%s409 + $0x18] sm:$0xff] %v1044
        %s1049 = sand.u32 %s291, 1
        %s1050 = scalar_lea.sflag [#allocation3], %s1049
        %s1051 = sand.u32 %s291, 1
        %s1052 = smul.addr %s1051, 32
        %s1053 = scalar_lea.vmem [#allocation2], %s1052
        // Predicated region
        $region69: #{tpu_custom_call.1} parent=67 // pred_check
          %p1054 = pneg %p301
        $region70: #{tpu_custom_call.1} parent=67 // pred_check_branch
          %1056 = sbr.rel (%p1054) target = $region72
        $region71: #{tpu_custom_call.1} parent=67 // pred_region
          %s1057 = smul.u32 2, %s26
          %s1059 = ssub.s32 512, 512
          %1060 = vsyncadd %s1050, %s1059
          %s1061 = smul.addr %s1057, 2
          %s1062 = smul.addr %s1061, 128
          %s1063 = scalar_lea.hbm %s12, %s1062
          %s1064 = sshll.u32 %s1053, 4
          %s1065 = int_to_ptr.vmem [resolvable:$true] %s1064
          %1070 = dma.vmem_to_hbm [thread:$0]  %s1065, 512, %s1063, %s1050, 256, 256, 16
        $region72: #{tpu_custom_call.1} parent=67 // pred_fallthru
          _
      $region68: #{tpu_custom_call.1} parent=5 // pred_fallthru
        _
      %p1071 = scmp.le.s32.totalorder 2, %s21
      // Predicated region
      $region73: #{tpu_custom_call.1} parent=5 // pred_check
        %p1072 = pneg %p1071
      $region74: #{tpu_custom_call.1} parent=5 // pred_check_branch
        %1074 = sbr.rel (%p1072) target = $region76
      $region75: #{tpu_custom_call.1} parent=5 // pred_region
        %s1075 = ssub.s32 %s21, 2
        // Predicated region
        $region77: #{tpu_custom_call.1} parent=75 // pred_check
          %p1076 = pneg %p307
        $region78: #{tpu_custom_call.1} parent=75 // pred_check_branch
          %1078 = sbr.rel (%p1076) target = $region80
        $region79: #{tpu_custom_call.1} parent=75 // pred_region
          %s1079 = sand.u32 %s292, 1
          %s1080 = scalar_lea.sflag [#allocation3], %s1079
          %s1081 = sand.u32 %s292, 1
          %s1082 = smul.addr %s1081, 32
          %s1083 = scalar_lea.vmem [#allocation2], %s1082
          %1084 = dma.done %s1080, 512
        $region80: #{tpu_custom_call.1} parent=75 // pred_fallthru
          _
      $region76: #{tpu_custom_call.1} parent=5 // pred_fallthru
        _
    $region6: #{tpu_custom_call.1} parent=1 // loop_footer
      %s25 = sadd.s32 1, %s21
    $region7: #{tpu_custom_call.1} parent=1 // loop_footer_branch
      %20 = sbr.rel target = $region3
    $region8: #{tpu_custom_call.1} parent=1 // loop_exit
      _
    %1085 = vsyncpa [#allocation3], 1
    %s1086 = scalar_lea.sflag [#allocation3], 1
    %1087 = vsyncpa %s1086, 1

// kernel: tpu_custom_call.1
$region0: #{tpu_custom_call.1}
  #allocation0 [shape = 'u32[]', space=smem, size = 0x4, offset = 0x4, fixed_abs, tag = 'smem constant byte address 0x4 - core index']
  #allocation1 [shape = 'u32[144,128]{1,0:T(1,128)}', space=vmem, size = 0x12000, scoped, tag = 'internal scratch']
  %s0 = inlined_call_operand.vmem [shape: f32[32,256], index: 0, kind: input, shape index: {}]
  %s1 = inlined_call_operand.vmem [shape: bf16[256,64], index: 1, kind: input, shape index: {}]
  %s2 = inlined_call_operand.vmem [shape: f32[1,64], index: 2, kind: input, shape index: {}]
  %s3 = inlined_call_operand.vmem [shape: f32[1,64], index: 3, kind: input, shape index: {}]
  %s4 = inlined_call_operand.vmem [shape: bf16[3,64,64], index: 4, kind: input, shape index: {}]
  %s5 = inlined_call_operand.vmem [shape: f32[1,64], index: 5, kind: input, shape index: {}]
  %s6 = inlined_call_operand.vmem [shape: f32[1,64], index: 6, kind: input, shape index: {}]
  %s7 = inlined_call_operand.vmem [shape: bf16[64,256], index: 7, kind: input, shape index: {}]
  %s8 = inlined_call_operand.vmem [shape: f32[1,256], index: 8, kind: input, shape index: {}]
  %s9 = inlined_call_operand.vmem [shape: f32[1,256], index: 9, kind: input, shape index: {}]
  %s10 = inlined_call_operand.vmem [shape: f32[16,1], index: 10, kind: input, shape index: {}]
  %s11 = inlined_call_operand.vmem [shape: f32[16,1], index: 11, kind: input, shape index: {}]
  %s12 = inlined_call_operand.hbm [shape: f32[32,256], index: 12, kind: output, shape index: {}]
  %s13 = sld [smem:[#allocation0]]
  $region81: #{tpu_custom_call.1} parent=0
    _
  %s15 = ssub.s32 1, %s13
  %s16 = scalar_select 0, %s15, %s13
  $region1: #{tpu_custom_call.1} parent=0
    #allocation2 [shape = 'u8[32768]{0}', space=vmem, size = 0x8000, scoped, tag = 'output window, operand 0']
    #allocation3 [shape = 's32[2]{0}', space=sflag, size = 0x8, scoped, tag = 'scoped memory for tpu_custom_call.1']
    %17 = vsyncpa [#allocation3], 0
    %s18 = scalar_lea.sflag [#allocation3], 1
    %19 = vsyncpa %s18, 0
    loop: start=0, step=1, limit=4
    $region2: #{tpu_custom_call.1} parent=1 // loop_pre_header
      _
    $region3: #{tpu_custom_call.1} parent=1 // loop_header
      %s21 = sphi 0, %s25
      %p22 = scmp.ge.s32.totalorder %s21, 4
      %s31 = sphi 0, %s33
      %s34 = sphi 0, %s31
      %s35 = sphi 0, %s34
      %s51 = sphi 0, %s35
      %s55 = sphi 0, %s55
      %s57 = sphi 0, %s55
      %s58 = sphi 0, %s57
      %s72 = sphi 0, %s58
      %s76 = sphi 0, %s76
      %s78 = sphi 0, %s76
      %s79 = sphi 0, %s78
      %s93 = sphi 0, %s79
      %s97 = sphi 0, %s97
      %s99 = sphi 0, %s97
      %s100 = sphi 0, %s99
      %s114 = sphi 0, %s100
      %s118 = sphi 0, %s118
      %s120 = sphi 0, %s118
      %s121 = sphi 0, %s120
      %s135 = sphi 0, %s121
      %s139 = sphi 0, %s139
      %s141 = sphi 0, %s139
      %s142 = sphi 0, %s141
      %s156 = sphi 0, %s142
      %s160 = sphi 0, %s160
      %s162 = sphi 0, %s160
      %s163 = sphi 0, %s162
      %s177 = sphi 0, %s163
      %s181 = sphi 0, %s181
      %s183 = sphi 0, %s181
      %s184 = sphi 0, %s183
      %s198 = sphi 0, %s184
      %s202 = sphi 0, %s202
      %s204 = sphi 0, %s202
      %s205 = sphi 0, %s204
      %s219 = sphi 0, %s205
      %s223 = sphi 0, %s223
      %s225 = sphi 0, %s223
      %s226 = sphi 0, %s225
      %s240 = sphi 0, %s226
      %s244 = sphi 0, %s244
      %s246 = sphi 0, %s244
      %s247 = sphi 0, %s246
      %s261 = sphi 0, %s247
      %s265 = sphi 0, %s265
      %s267 = sphi 0, %s265
      %s268 = sphi 0, %s267
      %s282 = sphi 0, %s268
      %s288 = sphi 0, %s290
      %s291 = sphi 0, %s288
      %s292 = sphi 0, %s291
      %s308 = sphi 0, %s292
    $region4: #{tpu_custom_call.1} parent=1 // loop_header_branch
      %24 = sbr.rel (%p22) target = $region8
    $region5: #{tpu_custom_call.1} parent=1 // loop_body
      %s26 = ssub.s32 %s21, 1
      %s27 = ssub.s32 %s21, 2
      %s28 = sadd.s32 %s21, 1
      %s29 = ssub.s32 %s21, %s28
      %p30 = scmp.eq.s32.totalorder %s29, 0
      %s32 = sadd.s32 %s31, 1
      %s33 = scalar_select %p30, %s31, %s32
      %p36 = pneg %p30
      %p37 = scmp.eq.s32.totalorder %s21, 1
      %p38 = por %p36, %p37
      %p39 = scmp.ne.s32.totalorder %s31, %s34
      %p40 = scmp.eq.s32.totalorder %s21, 0
      %p41 = por %p39, %p40
      %p42 = scmp.ne.s32.totalorder %s31, %s34
      %p43 = scmp.eq.s32.totalorder %s26, 1
      %p44 = por %p42, %p43
      %p45 = scmp.ne.s32.totalorder %s34, %s35
      %p46 = scmp.eq.s32.totalorder %s26, 0
      %p47 = por %p45, %p46
      %p48 = scmp.ne.s32.totalorder %s34, %s35
      %p49 = scmp.eq.s32.totalorder %s27, 1
      %p50 = por %p48, %p49
      %p52 = scmp.ne.s32.totalorder %s35, %s51
      %p53 = scmp.eq.s32.totalorder %s27, 0
      %p54 = por %p52, %p53
      %s56 = sadd.s32 %s55, 1
      %p59 = scmp.eq.s32.totalorder %s21, 1
      %p60 = scmp.ne.s32.totalorder %s55, %s57
      %p61 = scmp.eq.s32.totalorder %s21, 0
      %p62 = por %p60, %p61
      %p63 = scmp.ne.s32.totalorder %s55, %s57
      %p64 = scmp.eq.s32.totalorder %s26, 1
      %p65 = por %p63, %p64
      %p66 = scmp.ne.s32.totalorder %s57, %s58
      %p67 = scmp.eq.s32.totalorder %s26, 0
      %p68 = por %p66, %p67
      %p69 = scmp.ne.s32.totalorder %s57, %s58
      %p70 = scmp.eq.s32.totalorder %s27, 1
      %p71 = por %p69, %p70
      %p73 = scmp.ne.s32.totalorder %s58, %s72
      %p74 = scmp.eq.s32.totalorder %s27, 0
      %p75 = por %p73, %p74
      %s77 = sadd.s32 %s76, 1
      %p80 = scmp.eq.s32.totalorder %s21, 1
      %p81 = scmp.ne.s32.totalorder %s76, %s78
      %p82 = scmp.eq.s32.totalorder %s21, 0
      %p83 = por %p81, %p82
      %p84 = scmp.ne.s32.totalorder %s76, %s78
      %p85 = scmp.eq.s32.totalorder %s26, 1
      %p86 = por %p84, %p85
      %p87 = scmp.ne.s32.totalorder %s78, %s79
      %p88 = scmp.eq.s32.totalorder %s26, 0
      %p89 = por %p87, %p88
      %p90 = scmp.ne.s32.totalorder %s78, %s79
      %p91 = scmp.eq.s32.totalorder %s27, 1
      %p92 = por %p90, %p91
      %p94 = scmp.ne.s32.totalorder %s79, %s93
      %p95 = scmp.eq.s32.totalorder %s27, 0
      %p96 = por %p94, %p95
      %s98 = sadd.s32 %s97, 1
      %p101 = scmp.eq.s32.totalorder %s21, 1
      %p102 = scmp.ne.s32.totalorder %s97, %s99
      %p103 = scmp.eq.s32.totalorder %s21, 0
      %p104 = por %p102, %p103
      %p105 = scmp.ne.s32.totalorder %s97, %s99
      %p106 = scmp.eq.s32.totalorder %s26, 1
      %p107 = por %p105, %p106
      %p108 = scmp.ne.s32.totalorder %s99, %s100
      %p109 = scmp.eq.s32.totalorder %s26, 0
      %p110 = por %p108, %p109
      %p111 = scmp.ne.s32.totalorder %s99, %s100
      %p112 = scmp.eq.s32.totalorder %s27, 1
      %p113 = por %p111, %p112
      %p115 = scmp.ne.s32.totalorder %s100, %s114
      %p116 = scmp.eq.s32.totalorder %s27, 0
      %p117 = por %p115, %p116
      %s119 = sadd.s32 %s118, 1
      %p122 = scmp.eq.s32.totalorder %s21, 1
      %p123 = scmp.ne.s32.totalorder %s118, %s120
      %p124 = scmp.eq.s32.totalorder %s21, 0
      %p125 = por %p123, %p124
      %p126 = scmp.ne.s32.totalorder %s118, %s120
      %p127 = scmp.eq.s32.totalorder %s26, 1
      %p128 = por %p126, %p127
      %p129 = scmp.ne.s32.totalorder %s120, %s121
      %p130 = scmp.eq.s32.totalorder %s26, 0
      %p131 = por %p129, %p130
      %p132 = scmp.ne.s32.totalorder %s120, %s121
      %p133 = scmp.eq.s32.totalorder %s27, 1
      %p134 = por %p132, %p133
      %p136 = scmp.ne.s32.totalorder %s121, %s135
      %p137 = scmp.eq.s32.totalorder %s27, 0
      %p138 = por %p136, %p137
      %s140 = sadd.s32 %s139, 1
      %p143 = scmp.eq.s32.totalorder %s21, 1
      %p144 = scmp.ne.s32.totalorder %s139, %s141
      %p145 = scmp.eq.s32.totalorder %s21, 0
      %p146 = por %p144, %p145
      %p147 = scmp.ne.s32.totalorder %s139, %s141
      %p148 = scmp.eq.s32.totalorder %s26, 1
      %p149 = por %p147, %p148
      %p150 = scmp.ne.s32.totalorder %s141, %s142
      %p151 = scmp.eq.s32.totalorder %s26, 0
      %p152 = por %p150, %p151
      %p153 = scmp.ne.s32.totalorder %s141, %s142
      %p154 = scmp.eq.s32.totalorder %s27, 1
      %p155 = por %p153, %p154
      %p157 = scmp.ne.s32.totalorder %s142, %s156
      %p158 = scmp.eq.s32.totalorder %s27, 0
      %p159 = por %p157, %p158
      %s161 = sadd.s32 %s160, 1
      %p164 = scmp.eq.s32.totalorder %s21, 1
      %p165 = scmp.ne.s32.totalorder %s160, %s162
      %p166 = scmp.eq.s32.totalorder %s21, 0
      %p167 = por %p165, %p166
      %p168 = scmp.ne.s32.totalorder %s160, %s162
      %p169 = scmp.eq.s32.totalorder %s26, 1
      %p170 = por %p168, %p169
      %p171 = scmp.ne.s32.totalorder %s162, %s163
      %p172 = scmp.eq.s32.totalorder %s26, 0
      %p173 = por %p171, %p172
      %p174 = scmp.ne.s32.totalorder %s162, %s163
      %p175 = scmp.eq.s32.totalorder %s27, 1
      %p176 = por %p174, %p175
      %p178 = scmp.ne.s32.totalorder %s163, %s177
      %p179 = scmp.eq.s32.totalorder %s27, 0
      %p180 = por %p178, %p179
      %s182 = sadd.s32 %s181, 1
      %p185 = scmp.eq.s32.totalorder %s21, 1
      %p186 = scmp.ne.s32.totalorder %s181, %s183
      %p187 = scmp.eq.s32.totalorder %s21, 0
      %p188 = por %p186, %p187
      %p189 = scmp.ne.s32.totalorder %s181, %s183
      %p190 = scmp.eq.s32.totalorder %s26, 1
      %p191 = por %p189, %p190
      %p192 = scmp.ne.s32.totalorder %s183, %s184
      %p193 = scmp.eq.s32.totalorder %s26, 0
      %p194 = por %p192, %p193
      %p195 = scmp.ne.s32.totalorder %s183, %s184
      %p196 = scmp.eq.s32.totalorder %s27, 1
      %p197 = por %p195, %p196
      %p199 = scmp.ne.s32.totalorder %s184, %s198
      %p200 = scmp.eq.s32.totalorder %s27, 0
      %p201 = por %p199, %p200
      %s203 = sadd.s32 %s202, 1
      %p206 = scmp.eq.s32.totalorder %s21, 1
      %p207 = scmp.ne.s32.totalorder %s202, %s204
      %p208 = scmp.eq.s32.totalorder %s21, 0
      %p209 = por %p207, %p208
      %p210 = scmp.ne.s32.totalorder %s202, %s204
      %p211 = scmp.eq.s32.totalorder %s26, 1
      %p212 = por %p210, %p211
      %p213 = scmp.ne.s32.totalorder %s204, %s205
      %p214 = scmp.eq.s32.totalorder %s26, 0
      %p215 = por %p213, %p214
      %p216 = scmp.ne.s32.totalorder %s204, %s205
      %p217 = scmp.eq.s32.totalorder %s27, 1
      %p218 = por %p216, %p217
      %p220 = scmp.ne.s32.totalorder %s205, %s219
      %p221 = scmp.eq.s32.totalorder %s27, 0
      %p222 = por %p220, %p221
      %s224 = sadd.s32 %s223, 1
      %p227 = scmp.eq.s32.totalorder %s21, 1
      %p228 = scmp.ne.s32.totalorder %s223, %s225
      %p229 = scmp.eq.s32.totalorder %s21, 0
      %p230 = por %p228, %p229
      %p231 = scmp.ne.s32.totalorder %s223, %s225
      %p232 = scmp.eq.s32.totalorder %s26, 1
      %p233 = por %p231, %p232
      %p234 = scmp.ne.s32.totalorder %s225, %s226
      %p235 = scmp.eq.s32.totalorder %s26, 0
      %p236 = por %p234, %p235
      %p237 = scmp.ne.s32.totalorder %s225, %s226
      %p238 = scmp.eq.s32.totalorder %s27, 1
      %p239 = por %p237, %p238
      %p241 = scmp.ne.s32.totalorder %s226, %s240
      %p242 = scmp.eq.s32.totalorder %s27, 0
      %p243 = por %p241, %p242
      %s245 = sadd.s32 %s244, 1
      %p248 = scmp.eq.s32.totalorder %s21, 1
      %p249 = scmp.ne.s32.totalorder %s244, %s246
      %p250 = scmp.eq.s32.totalorder %s21, 0
      %p251 = por %p249, %p250
      %p252 = scmp.ne.s32.totalorder %s244, %s246
      %p253 = scmp.eq.s32.totalorder %s26, 1
      %p254 = por %p252, %p253
      %p255 = scmp.ne.s32.totalorder %s246, %s247
      %p256 = scmp.eq.s32.totalorder %s26, 0
      %p257 = por %p255, %p256
      %p258 = scmp.ne.s32.totalorder %s246, %s247
      %p259 = scmp.eq.s32.totalorder %s27, 1
      %p260 = por %p258, %p259
      %p262 = scmp.ne.s32.totalorder %s247, %s261
      %p263 = scmp.eq.s32.totalorder %s27, 0
      %p264 = por %p262, %p263
      %s266 = sadd.s32 %s265, 1
      %p269 = scmp.eq.s32.totalorder %s21, 1
      %p270 = scmp.ne.s32.totalorder %s265, %s267
      %p271 = scmp.eq.s32.totalorder %s21, 0
      %p272 = por %p270, %p271
      %p273 = scmp.ne.s32.totalorder %s265, %s267
      %p274 = scmp.eq.s32.totalorder %s26, 1
      %p275 = por %p273, %p274
      %p276 = scmp.ne.s32.totalorder %s267, %s268
      %p277 = scmp.eq.s32.totalorder %s26, 0
      %p278 = por %p276, %p277
      %p279 = scmp.ne.s32.totalorder %s267, %s268
      %p280 = scmp.eq.s32.totalorder %s27, 1
      %p281 = por %p279, %p280
      %p283 = scmp.ne.s32.totalorder %s268, %s282
      %p284 = scmp.eq.s32.totalorder %s27, 0
      %p285 = por %p283, %p284
      %s286 = ssub.s32 %s21, %s28
      %p287 = scmp.eq.s32.totalorder %s286, 0
      %s289 = sadd.s32 %s288, 1
      %s290 = scalar_select %p287, %s288, %s289
      %p293 = pneg %p287
      %p294 = scmp.eq.s32.totalorder %s21, 1
      %p295 = por %p293, %p294
      %p296 = scmp.ne.s32.totalorder %s288, %s291
      %p297 = scmp.eq.s32.totalorder %s21, 0
      %p298 = por %p296, %p297
      %p299 = scmp.ne.s32.totalorder %s288, %s291
      %p300 = scmp.eq.s32.totalorder %s26, 1
      %p301 = por %p299, %p300
      %p302 = scmp.ne.s32.totalorder %s291, %s292
      %p303 = scmp.eq.s32.totalorder %s26, 0
      %p304 = por %p302, %p303
      %p305 = scmp.ne.s32.totalorder %s291, %s292
      %p306 = scmp.eq.s32.totalorder %s27, 1
      %p307 = por %p305, %p306
      %p309 = scmp.ne.s32.totalorder %s292, %s308
      %p310 = scmp.eq.s32.totalorder %s27, 0
      %p311 = por %p309, %p310
      %p312 = scmp.le.s32.totalorder 1, %s21
      %p313 = scmp.lt.s32.totalorder %s21, 3
      %p314 = pnand %p312, %p313
      %p315 = pneg %p314
      // Predicated region
      $region9: #{tpu_custom_call.1} parent=5 // pred_check
        _
      $region10: #{tpu_custom_call.1} parent=5 // pred_check_branch
        %317 = sbr.rel (%p314) target = $region12
      $region11: #{tpu_custom_call.1} parent=5 // pred_region
        %s318 = ssub.s32 %s21, 1
        // Predicated region
        $region13: #{tpu_custom_call.1} parent=11 // pred_check
          %p319 = pneg %p68
        $region14: #{tpu_custom_call.1} parent=11 // pred_check_branch
          %321 = sbr.rel (%p319) target = $region16
        $region15: #{tpu_custom_call.1} parent=11 // pred_region
          _
        $region16: #{tpu_custom_call.1} parent=11 // pred_fallthru
          _
        // Predicated region
        $region17: #{tpu_custom_call.1} parent=11 // pred_check
          %p322 = pneg %p89
        $region18: #{tpu_custom_call.1} parent=11 // pred_check_branch
          %324 = sbr.rel (%p322) target = $region20
        $region19: #{tpu_custom_call.1} parent=11 // pred_region
          _
        $region20: #{tpu_custom_call.1} parent=11 // pred_fallthru
          _
        // Predicated region
        $region21: #{tpu_custom_call.1} parent=11 // pred_check
          %p325 = pneg %p110
        $region22: #{tpu_custom_call.1} parent=11 // pred_check_branch
          %327 = sbr.rel (%p325) target = $region24
        $region23: #{tpu_custom_call.1} parent=11 // pred_region
          _
        $region24: #{tpu_custom_call.1} parent=11 // pred_fallthru
          _
        // Predicated region
        $region25: #{tpu_custom_call.1} parent=11 // pred_check
          %p328 = pneg %p131
        $region26: #{tpu_custom_call.1} parent=11 // pred_check_branch
          %330 = sbr.rel (%p328) target = $region28
        $region27: #{tpu_custom_call.1} parent=11 // pred_region
          _
        $region28: #{tpu_custom_call.1} parent=11 // pred_fallthru
          _
        // Predicated region
        $region29: #{tpu_custom_call.1} parent=11 // pred_check
          %p331 = pneg %p152
        $region30: #{tpu_custom_call.1} parent=11 // pred_check_branch
          %333 = sbr.rel (%p331) target = $region32
        $region31: #{tpu_custom_call.1} parent=11 // pred_region
          _
        $region32: #{tpu_custom_call.1} parent=11 // pred_fallthru
          _
        // Predicated region
        $region33: #{tpu_custom_call.1} parent=11 // pred_check
          %p334 = pneg %p173
        $region34: #{tpu_custom_call.1} parent=11 // pred_check_branch
          %336 = sbr.rel (%p334) target = $region36
        $region35: #{tpu_custom_call.1} parent=11 // pred_region
          _
        $region36: #{tpu_custom_call.1} parent=11 // pred_fallthru
          _
        // Predicated region
        $region37: #{tpu_custom_call.1} parent=11 // pred_check
          %p337 = pneg %p194
        $region38: #{tpu_custom_call.1} parent=11 // pred_check_branch
          %339 = sbr.rel (%p337) target = $region40
        $region39: #{tpu_custom_call.1} parent=11 // pred_region
          _
        $region40: #{tpu_custom_call.1} parent=11 // pred_fallthru
          _
        // Predicated region
        $region41: #{tpu_custom_call.1} parent=11 // pred_check
          %p340 = pneg %p215
        $region42: #{tpu_custom_call.1} parent=11 // pred_check_branch
          %342 = sbr.rel (%p340) target = $region44
        $region43: #{tpu_custom_call.1} parent=11 // pred_region
          _
        $region44: #{tpu_custom_call.1} parent=11 // pred_fallthru
          _
        // Predicated region
        $region45: #{tpu_custom_call.1} parent=11 // pred_check
          %p343 = pneg %p236
        $region46: #{tpu_custom_call.1} parent=11 // pred_check_branch
          %345 = sbr.rel (%p343) target = $region48
        $region47: #{tpu_custom_call.1} parent=11 // pred_region
          _
        $region48: #{tpu_custom_call.1} parent=11 // pred_fallthru
          _
        // Predicated region
        $region49: #{tpu_custom_call.1} parent=11 // pred_check
          %p346 = pneg %p257
        $region50: #{tpu_custom_call.1} parent=11 // pred_check_branch
          %348 = sbr.rel (%p346) target = $region52
        $region51: #{tpu_custom_call.1} parent=11 // pred_region
          _
        $region52: #{tpu_custom_call.1} parent=11 // pred_fallthru
          _
        // Predicated region
        $region53: #{tpu_custom_call.1} parent=11 // pred_check
          %p349 = pneg %p278
        $region54: #{tpu_custom_call.1} parent=11 // pred_check_branch
          %351 = sbr.rel (%p349) target = $region56
        $region55: #{tpu_custom_call.1} parent=11 // pred_region
          _
        $region56: #{tpu_custom_call.1} parent=11 // pred_fallthru
          _
      $region12: #{tpu_custom_call.1} parent=5 // pred_fallthru
        _
      %p352 = scmp.lt.s32.totalorder %s21, 2
      // Predicated region
      $region57: #{tpu_custom_call.1} parent=5 // pred_check
        %p353 = pneg %p352
      $region58: #{tpu_custom_call.1} parent=5 // pred_check_branch
        %355 = sbr.rel (%p353) target = $region60
      $region59: #{tpu_custom_call.1} parent=5 // pred_region
        // Predicated region
        $region61: #{tpu_custom_call.1} parent=59 // pred_check
          %p356 = pneg %p41
        $region62: #{tpu_custom_call.1} parent=59 // pred_check_branch
          %358 = sbr.rel (%p356) target = $region64
        $region63: #{tpu_custom_call.1} parent=59 // pred_region
          %s359 = smul.u32 2, %s21
          %p360 = scmp.lt.s32.totalorder %s359, 3
          %s361 = scalar_select %p360, %s359, 3
          %s362 = smul.addr %s361, 2
          %s363 = smul.addr %s362, 8
          %s364 = scalar_lea.vmem %s0, %s363
          %s365 = smul.u32 2, %s21
        $region64: #{tpu_custom_call.1} parent=59 // pred_fallthru
          _
      $region60: #{tpu_custom_call.1} parent=5 // pred_fallthru
        _
      %p366 = scmp.le.s32.totalorder 1, %s21
      %p367 = scmp.lt.s32.totalorder %s21, 3
      %p368 = pnand %p366, %p367
      %p369 = pneg %p368
      // Predicated region
      $region65: #{tpu_custom_call.1} parent=5 // pred_check
        _
      $region66: #{tpu_custom_call.1} parent=5 // pred_check_branch
        %371 = sbr.rel (%p368) target = $region68
      $region67: #{tpu_custom_call.1} parent=5 // pred_region
        %s372 = ssub.s32 %s21, 1
        %s373 = smul.u32 2, %s26
        %p374 = scmp.lt.s32.totalorder %s373, 3
        %s375 = scalar_select %p374, %s373, 3
        %s376 = smul.addr %s375, 2
        %s377 = smul.addr %s376, 8
        %s378 = scalar_lea.vmem %s0, %s377
        %p379 = pneg %p47
        %p380 = pneg %p44
        %p381 = pneg %p68
        %p382 = pneg %p65
        %p383 = pneg %p89
        %p384 = pneg %p86
        %p385 = pneg %p110
        %p386 = pneg %p107
        %p387 = pneg %p131
        %p388 = pneg %p128
        %p389 = pneg %p152
        %p390 = pneg %p149
        %p391 = pneg %p173
        %p392 = pneg %p170
        %p393 = pneg %p194
        %p394 = pneg %p191
        %p395 = pneg %p215
        %p396 = pneg %p212
        %p397 = pneg %p236
        %p398 = pneg %p233
        %p399 = pneg %p257
        %p400 = pneg %p254
        %p401 = pneg %p278
        %p402 = pneg %p275
        %p403 = pneg %p304
        %p404 = pneg %p301
        %s405 = sand.u32 %s291, 1
        %s406 = scalar_lea.sflag [#allocation3], %s405
        %s407 = sand.u32 %s291, 1
        %s408 = smul.addr %s407, 32
        %s409 = scalar_lea.vmem [#allocation2], %s408
        %s410 = smul.u32 2, %s26
        %p411 = scmp.lt.s32.totalorder %s410, 3
        %s412 = scalar_select %p411, %s410, 3
        %s413 = smul.addr %s412, 2
        %s414 = smul.addr %s413, 8
        %s415 = scalar_lea.vmem %s0, %s414
        %s416 = smul.u32 2, %s26
        %s417 = smul.u32 2, %s26
        %v419 = vld [vmem:[%s415] sm:$0xff]
        %v420 = vld [vmem:[%s415 + $0x8] sm:$0xff]
        %v421 = vld [vmem:[%s415 + $0x10] sm:$0xff]
        %v422 = vld [vmem:[%s415 + $0x18] sm:$0xff]
        %v423 = vpack.c.bf16 %v421, %v419
        %v424 = vpack.c.bf16 %v422, %v420
        %v425 = vld [vmem:[%s1] sm:$0xf]
        %v426 = vld [vmem:[%s1 + $0x4] sm:$0xf]
        %v427 = vld [vmem:[%s1 + $0x8] sm:$0xf]
        %v428 = vld [vmem:[%s1 + $0xc] sm:$0xf]
        %v429 = vld [vmem:[%s1 + $0x10] sm:$0xf]
        %v430 = vld [vmem:[%s1 + $0x14] sm:$0xf]
        %v431 = vld [vmem:[%s1 + $0x18] sm:$0xf]
        %v432 = vld [vmem:[%s1 + $0x1c] sm:$0xf]
        %v433 = vld [vmem:[%s1 + $0x20] sm:$0xf]
        %v434 = vld [vmem:[%s1 + $0x24] sm:$0xf]
        %v435 = vld [vmem:[%s1 + $0x28] sm:$0xf]
        %v436 = vld [vmem:[%s1 + $0x2c] sm:$0xf]
        %v437 = vld [vmem:[%s1 + $0x30] sm:$0xf]
        %v438 = vld [vmem:[%s1 + $0x34] sm:$0xf]
        %v439 = vld [vmem:[%s1 + $0x38] sm:$0xf]
        %v440 = vld [vmem:[%s1 + $0x3c] sm:$0xf]
        %v441 = vld [vmem:[%s1 + $0x40] sm:$0xf]
        %v442 = vld [vmem:[%s1 + $0x44] sm:$0xf]
        %v443 = vld [vmem:[%s1 + $0x48] sm:$0xf]
        %v444 = vld [vmem:[%s1 + $0x4c] sm:$0xf]
        %v445 = vld [vmem:[%s1 + $0x50] sm:$0xf]
        %v446 = vld [vmem:[%s1 + $0x54] sm:$0xf]
        %v447 = vld [vmem:[%s1 + $0x58] sm:$0xf]
        %v448 = vld [vmem:[%s1 + $0x5c] sm:$0xf]
        %v449 = vld [vmem:[%s1 + $0x60] sm:$0xf]
        %v450 = vld [vmem:[%s1 + $0x64] sm:$0xf]
        %v451 = vld [vmem:[%s1 + $0x68] sm:$0xf]
        %v452 = vld [vmem:[%s1 + $0x6c] sm:$0xf]
        %v453 = vld [vmem:[%s1 + $0x70] sm:$0xf]
        %v454 = vld [vmem:[%s1 + $0x74] sm:$0xf]
        %v455 = vld [vmem:[%s1 + $0x78] sm:$0xf]
        %v456 = vld [vmem:[%s1 + $0x7c] sm:$0xf]
        %v489 = vunpack.c.l.b16 %v425
        %v490 = vunpack.c.l.b16 %v426
        %v491 = vunpack.c.l.b16 %v427
        %v492 = vunpack.c.l.b16 %v428
        %v493 = vunpack.c.l.b16 %v429
        %v494 = vunpack.c.l.b16 %v430
        %v495 = vunpack.c.l.b16 %v431
        %v496 = vunpack.c.l.b16 %v432
        %v497 = vunpack.c.l.b16 %v433
        %v498 = vunpack.c.l.b16 %v434
        %v499 = vunpack.c.l.b16 %v435
        %v500 = vunpack.c.l.b16 %v436
        %v501 = vunpack.c.l.b16 %v437
        %v502 = vunpack.c.l.b16 %v438
        %v503 = vunpack.c.l.b16 %v439
        %v504 = vunpack.c.l.b16 %v440
        %v505 = vunpack.c.l.b16 %v441
        %v506 = vunpack.c.l.b16 %v442
        %v507 = vunpack.c.l.b16 %v443
        %v508 = vunpack.c.l.b16 %v444
        %v509 = vunpack.c.l.b16 %v445
        %v510 = vunpack.c.l.b16 %v446
        %v511 = vunpack.c.l.b16 %v447
        %v512 = vunpack.c.l.b16 %v448
        %v513 = vunpack.c.l.b16 %v449
        %v514 = vunpack.c.l.b16 %v450
        %v515 = vunpack.c.l.b16 %v451
        %v516 = vunpack.c.l.b16 %v452
        %v517 = vunpack.c.l.b16 %v453
        %v518 = vunpack.c.l.b16 %v454
        %v519 = vunpack.c.l.b16 %v455
        %v520 = vunpack.c.l.b16 %v456
        %v521 = vpack.c.b16 %v490, %v489
        %v522 = vpack.c.b16 %v492, %v491
        %v523 = vpack.c.b16 %v494, %v493
        %v524 = vpack.c.b16 %v496, %v495
        %v525 = vpack.c.b16 %v498, %v497
        %v526 = vpack.c.b16 %v500, %v499
        %v527 = vpack.c.b16 %v502, %v501
        %v528 = vpack.c.b16 %v504, %v503
        %v529 = vpack.c.b16 %v506, %v505
        %v530 = vpack.c.b16 %v508, %v507
        %v531 = vpack.c.b16 %v510, %v509
        %v532 = vpack.c.b16 %v512, %v511
        %v533 = vpack.c.b16 %v514, %v513
        %v534 = vpack.c.b16 %v516, %v515
        %v535 = vpack.c.b16 %v518, %v517
        %v536 = vpack.c.b16 %v520, %v519
        %553 = vmatprep.subr.bf16.mxu0 0
        %554 = vmatpush1.bf16.msra.mxu0 %v521
        %555 = vmatprep.subr.bf16.mxu0 0
        %556 = vmatpush1.bf16.msra.mxu0 %v522
        %557 = vmatprep.subr.bf16.mxu0 0
        %558 = vmatpush1.bf16.msra.mxu0 %v523
        %559 = vmatprep.subr.bf16.mxu0 0
        %560 = vmatpush1.bf16.msra.mxu0 %v524
        %561 = vmatprep.subr.bf16.mxu0 0
        %562 = vmatpush1.bf16.msra.mxu0 %v525
        %563 = vmatprep.subr.bf16.mxu0 0
        %564 = vmatpush1.bf16.msra.mxu0 %v526
        %565 = vmatprep.subr.bf16.mxu0 0
        %566 = vmatpush1.bf16.msra.mxu0 %v527
        %567 = vmatprep.subr.bf16.mxu0 0
        %568 = vmatpush1.bf16.msra.mxu0 %v528
        %569 = vmatprep.subr.bf16.mxu0 0
        %570 = vmatpush1.bf16.msra.mxu0 %v529
        %571 = vmatprep.subr.bf16.mxu0 0
        %572 = vmatpush1.bf16.msra.mxu0 %v530
        %573 = vmatprep.subr.bf16.mxu0 0
        %574 = vmatpush1.bf16.msra.mxu0 %v531
        %575 = vmatprep.subr.bf16.mxu0 0
        %576 = vmatpush1.bf16.msra.mxu0 %v532
        %577 = vmatprep.subr.bf16.mxu0 0
        %578 = vmatpush1.bf16.msra.mxu0 %v533
        %579 = vmatprep.subr.bf16.mxu0 0
        %580 = vmatpush1.bf16.msra.mxu0 %v534
        %581 = vmatprep.subr.bf16.mxu0 0
        %582 = vmatpush1.bf16.msra.mxu0 %v535
        %583 = vmatprep.subr.bf16.mxu0 0
        %584 = vmatpush1.bf16.msra.mxu0 %v536
        %585 = vmatprep.mubr.bf16.mxu0 %v424
        %586 = vmatmul.mubr.bf16.gmra.mrb[0].mxu0 %v423
        %v587 = vpop.f32.mrb[0].mxu0
        %v588 = vadd.f32 0.0, %v587
        %v589 = vpop.f32.mrb[0].mxu0
        %v590 = vpop.f32.mrb[0].mxu0
        %v591 = vadd.f32 0.0, %v590
        %v592 = vpop.f32.mrb[0].mxu0
        %593 = vdwg.mxu0
        %v594 = vld [vmem:[%s2] sm:$0x1]
        %v596 = vlaneseq
        %v597 = vshrl.u32 %v596, 7
        %v598 = vsub.s32 0, %v597
        %v599 = vrot.slane %v594, %v598
        %v601 = vmul.f32 %v588, %v599
        %v602 = vmul.f32 %v591, %v599
        %v603 = vld [vmem:[%s3] sm:$0x1]
        %v605 = vlaneseq
        %v606 = vshrl.u32 %v605, 7
        %v607 = vsub.s32 0, %v606
        %v608 = vrot.slane %v603, %v607
        %v610 = vadd.f32 %v601, %v608
        %v611 = vadd.f32 %v602, %v608
        %v612 = vmax.f32 %v610, 0.0
        %v613 = vmax.f32 %v611, 0.0
        %v614 = vrot.slane %v612, 1
        %v615 = vrot.slane %v613, 1
        %v616 = vlaneseq
        %v617 = vshrl.u32 %v616, 7
        %vm618 = vcmp.lt.s32.totalorder %v617, 7
        %v619 = vsel %vm618, %v614, %v615
        %v620 = vsel %vm618, %v615, %v614
        %v621 = vld [vmem:[%s10] sm:$0xff]
        %v622 = vld [vmem:[%s10 + $0x8] sm:$0xff]
        %624 = vset.pattern.permute.xlu0 0
        %625 = vperm.xlu0 %624, %v621
        %v626 = vpop.permute.xlu0 %625
        %629 = vset.pattern.permute.xlu0 0
        %630 = vperm.xlu0 %629, %v622
        %v631 = vpop.permute.xlu0 %630
        %v633 = vmul.f32 %v619, %v626
        %v634 = vmul.f32 %v620, %v631
        %v635 = vrot.slane %v612, 7
        %v636 = vrot.slane %v613, 7
        %vm637 = vcmp.lt.s32.totalorder %v617, 1
        %v638 = vsel %vm637, %v635, %v636
        %v639 = vsel %vm637, %v636, %v635
        %v640 = vld [vmem:[%s11] sm:$0xff]
        %v641 = vld [vmem:[%s11 + $0x8] sm:$0xff]
        %643 = vset.pattern.permute.xlu0 0
        %644 = vperm.xlu0 %643, %v640
        %v645 = vpop.permute.xlu0 %644
        %648 = vset.pattern.permute.xlu0 0
        %649 = vperm.xlu0 %648, %v641
        %v650 = vpop.permute.xlu0 %649
        %v652 = vmul.f32 %v639, %v645
        %v653 = vmul.f32 %v638, %v650
        %v654 = vpack.c.bf16 %v653, %v652
        %v655 = vld [vmem:[%s4] sm:$0xf]
        %v656 = vld [vmem:[%s4 + $0x4] sm:$0xf]
        %v657 = vld [vmem:[%s4 + $0x8] sm:$0xf]
        %v658 = vld [vmem:[%s4 + $0xc] sm:$0xf]
        %v659 = vld [vmem:[%s4 + $0x10] sm:$0xf]
        %v660 = vld [vmem:[%s4 + $0x14] sm:$0xf]
        %v661 = vld [vmem:[%s4 + $0x18] sm:$0xf]
        %v662 = vld [vmem:[%s4 + $0x1c] sm:$0xf]
        %v663 = vpack.c.bf16 %v613, %v612
        %s664 = scalar_lea.vmem %s4, 32
        %v665 = vld [vmem:[%s664] sm:$0xf]
        %v666 = vld [vmem:[%s664 + $0x4] sm:$0xf]
        %v667 = vld [vmem:[%s664 + $0x8] sm:$0xf]
        %v668 = vld [vmem:[%s664 + $0xc] sm:$0xf]
        %v669 = vld [vmem:[%s664 + $0x10] sm:$0xf]
        %v670 = vld [vmem:[%s664 + $0x14] sm:$0xf]
        %v671 = vld [vmem:[%s664 + $0x18] sm:$0xf]
        %v672 = vld [vmem:[%s664 + $0x1c] sm:$0xf]
        %v681 = vunpack.c.l.b16 %v665
        %v682 = vunpack.c.l.b16 %v666
        %v683 = vunpack.c.l.b16 %v667
        %v684 = vunpack.c.l.b16 %v668
        %v685 = vunpack.c.l.b16 %v669
        %v686 = vunpack.c.l.b16 %v670
        %v687 = vunpack.c.l.b16 %v671
        %v688 = vunpack.c.l.b16 %v672
        %v689 = vpack.c.b16 %v682, %v681
        %v690 = vpack.c.b16 %v684, %v683
        %v691 = vpack.c.b16 %v686, %v685
        %v692 = vpack.c.b16 %v688, %v687
        %vm697 = vcmask 523264
        %v699 = vsel %vm697, %v663, 0
        %701 = vmatprep.subr.bf16.mxu0 0
        %702 = vmatpush1.bf16.msra.mxu0 %v689
        %703 = vmatprep.subr.bf16.mxu0 0
        %704 = vmatpush1.bf16.msra.mxu0 %v690
        %705 = vmatprep.subr.bf16.mxu0 0
        %706 = vmatpush1.bf16.msra.mxu0 %v691
        %707 = vmatprep.subr.bf16.mxu0 0
        %708 = vmatpush1.bf16.msra.mxu0 %v692
        %709 = vmatprep.subr.bf16.mxu0 0
        %710 = vmatpush1.bf16.msra.mxu0 0
        %711 = vmatprep.subr.bf16.mxu0 0
        %712 = vmatpush1.bf16.msra.mxu0 0
        %713 = vmatprep.subr.bf16.mxu0 0
        %714 = vmatpush1.bf16.msra.mxu0 0
        %715 = vmatprep.subr.bf16.mxu0 0
        %716 = vmatpush1.bf16.msra.mxu0 0
        %717 = vmatprep.subr.bf16.mxu0 0
        %718 = vmatpush1.bf16.msra.mxu0 0
        %719 = vmatprep.subr.bf16.mxu0 0
        %720 = vmatpush1.bf16.msra.mxu0 0
        %721 = vmatprep.subr.bf16.mxu0 0
        %722 = vmatpush1.bf16.msra.mxu0 0
        %723 = vmatprep.subr.bf16.mxu0 0
        %724 = vmatpush1.bf16.msra.mxu0 0
        %725 = vmatprep.subr.bf16.mxu0 0
        %726 = vmatpush1.bf16.msra.mxu0 0
        %727 = vmatprep.subr.bf16.mxu0 0
        %728 = vmatpush1.bf16.msra.mxu0 0
        %729 = vmatprep.subr.bf16.mxu0 0
        %730 = vmatpush1.bf16.msra.mxu0 0
        %731 = vmatprep.subr.bf16.mxu0 0
        %732 = vmatpush1.bf16.msra.mxu0 0
        %733 = vmatprep.mubr.bf16.mxu0 0
        %734 = vmatmul.mubr.bf16.gmra.mrb[0].mxu0 %v699
        %v735 = vpop.f32.mrb[0].mxu0
        %v736 = vadd.f32 0.0, %v735
        %v737 = vpop.f32.mrb[0].mxu0
        %v738 = vpop.f32.mrb[0].mxu0
        %v739 = vadd.f32 0.0, %v738
        %v740 = vpop.f32.mrb[0].mxu0
        %741 = vdwg.mxu0
        %v750 = vunpack.c.l.b16 %v655
        %v751 = vunpack.c.l.b16 %v656
        %v752 = vunpack.c.l.b16 %v657
        %v753 = vunpack.c.l.b16 %v658
        %v754 = vunpack.c.l.b16 %v659
        %v755 = vunpack.c.l.b16 %v660
        %v756 = vunpack.c.l.b16 %v661
        %v757 = vunpack.c.l.b16 %v662
        %v758 = vpack.c.b16 %v751, %v750
        %v759 = vpack.c.b16 %v753, %v752
        %v760 = vpack.c.b16 %v755, %v754
        %v761 = vpack.c.b16 %v757, %v756
        %v767 = vsel %vm697, %v654, 0
        %769 = vmatprep.subr.bf16.mxu0 0
        %770 = vmatpush1.bf16.msra.mxu0 %v758
        %771 = vmatprep.subr.bf16.mxu0 0
        %772 = vmatpush1.bf16.msra.mxu0 %v759
        %773 = vmatprep.subr.bf16.mxu0 0
        %774 = vmatpush1.bf16.msra.mxu0 %v760
        %775 = vmatprep.subr.bf16.mxu0 0
        %776 = vmatpush1.bf16.msra.mxu0 %v761
        %777 = vmatprep.subr.bf16.mxu0 0
        %778 = vmatpush1.bf16.msra.mxu0 0
        %779 = vmatprep.subr.bf16.mxu0 0
        %780 = vmatpush1.bf16.msra.mxu0 0
        %781 = vmatprep.subr.bf16.mxu0 0
        %782 = vmatpush1.bf16.msra.mxu0 0
        %783 = vmatprep.subr.bf16.mxu0 0
        %784 = vmatpush1.bf16.msra.mxu0 0
        %785 = vmatprep.subr.bf16.mxu0 0
        %786 = vmatpush1.bf16.msra.mxu0 0
        %787 = vmatprep.subr.bf16.mxu0 0
        %788 = vmatpush1.bf16.msra.mxu0 0
        %789 = vmatprep.subr.bf16.mxu0 0
        %790 = vmatpush1.bf16.msra.mxu0 0
        %791 = vmatprep.subr.bf16.mxu0 0
        %792 = vmatpush1.bf16.msra.mxu0 0
        %793 = vmatprep.subr.bf16.mxu0 0
        %794 = vmatpush1.bf16.msra.mxu0 0
        %795 = vmatprep.subr.bf16.mxu0 0
        %796 = vmatpush1.bf16.msra.mxu0 0
        %797 = vmatprep.subr.bf16.mxu0 0
        %798 = vmatpush1.bf16.msra.mxu0 0
        %799 = vmatprep.subr.bf16.mxu0 0
        %800 = vmatpush1.bf16.msra.mxu0 0
        %801 = vmatprep.mubr.bf16.mxu0 0
        %802 = vmatmul.mubr.bf16.gmra.mrb[0].mxu0 %v767
        %v803 = vpop.f32.mrb[0].mxu0
        %v804 = vadd.f32 %v736, %v803
        %v805 = vpop.f32.mrb[0].mxu0
        %v806 = vpop.f32.mrb[0].mxu0
        %v807 = vadd.f32 %v739, %v806
        %v808 = vpop.f32.mrb[0].mxu0
        %809 = vdwg.mxu0
        %v810 = vpack.c.bf16 %v634, %v633
        %s811 = scalar_lea.vmem %s4, 64
        %v812 = vld [vmem:[%s811] sm:$0xf]
        %v813 = vld [vmem:[%s811 + $0x4] sm:$0xf]
        %v814 = vld [vmem:[%s811 + $0x8] sm:$0xf]
        %v815 = vld [vmem:[%s811 + $0xc] sm:$0xf]
        %v816 = vld [vmem:[%s811 + $0x10] sm:$0xf]
        %v817 = vld [vmem:[%s811 + $0x14] sm:$0xf]
        %v818 = vld [vmem:[%s811 + $0x18] sm:$0xf]
        %v819 = vld [vmem:[%s811 + $0x1c] sm:$0xf]
        %v828 = vunpack.c.l.b16 %v812
        %v829 = vunpack.c.l.b16 %v813
        %v830 = vunpack.c.l.b16 %v814
        %v831 = vunpack.c.l.b16 %v815
        %v832 = vunpack.c.l.b16 %v816
        %v833 = vunpack.c.l.b16 %v817
        %v834 = vunpack.c.l.b16 %v818
        %v835 = vunpack.c.l.b16 %v819
        %v836 = vpack.c.b16 %v829, %v828
        %v837 = vpack.c.b16 %v831, %v830
        %v838 = vpack.c.b16 %v833, %v832
        %v839 = vpack.c.b16 %v835, %v834
        %v845 = vsel %vm697, %v810, 0
        %847 = vmatprep.subr.bf16.mxu0 0
        %848 = vmatpush1.bf16.msra.mxu0 %v836
        %849 = vmatprep.subr.bf16.mxu0 0
        %850 = vmatpush1.bf16.msra.mxu0 %v837
        %851 = vmatprep.subr.bf16.mxu0 0
        %852 = vmatpush1.bf16.msra.mxu0 %v838
        %853 = vmatprep.subr.bf16.mxu0 0
        %854 = vmatpush1.bf16.msra.mxu0 %v839
        %855 = vmatprep.subr.bf16.mxu0 0
        %856 = vmatpush1.bf16.msra.mxu0 0
        %857 = vmatprep.subr.bf16.mxu0 0
        %858 = vmatpush1.bf16.msra.mxu0 0
        %859 = vmatprep.subr.bf16.mxu0 0
        %860 = vmatpush1.bf16.msra.mxu0 0
        %861 = vmatprep.subr.bf16.mxu0 0
        %862 = vmatpush1.bf16.msra.mxu0 0
        %863 = vmatprep.subr.bf16.mxu0 0
        %864 = vmatpush1.bf16.msra.mxu0 0
        %865 = vmatprep.subr.bf16.mxu0 0
        %866 = vmatpush1.bf16.msra.mxu0 0
        %867 = vmatprep.subr.bf16.mxu0 0
        %868 = vmatpush1.bf16.msra.mxu0 0
        %869 = vmatprep.subr.bf16.mxu0 0
        %870 = vmatpush1.bf16.msra.mxu0 0
        %871 = vmatprep.subr.bf16.mxu0 0
        %872 = vmatpush1.bf16.msra.mxu0 0
        %873 = vmatprep.subr.bf16.mxu0 0
        %874 = vmatpush1.bf16.msra.mxu0 0
        %875 = vmatprep.subr.bf16.mxu0 0
        %876 = vmatpush1.bf16.msra.mxu0 0
        %877 = vmatprep.subr.bf16.mxu0 0
        %878 = vmatpush1.bf16.msra.mxu0 0
        %879 = vmatprep.mubr.bf16.mxu0 0
        %880 = vmatmul.mubr.bf16.gmra.mrb[0].mxu0 %v845
        %v881 = vpop.f32.mrb[0].mxu0
        %v882 = vadd.f32 0.0, %v881
        %v883 = vpop.f32.mrb[0].mxu0
        %v884 = vpop.f32.mrb[0].mxu0
        %v885 = vadd.f32 0.0, %v884
        %v886 = vpop.f32.mrb[0].mxu0
        %887 = vdwg.mxu0
        %v888 = vadd.f32 %v804, %v882
        %v889 = vadd.f32 %v807, %v885
        %v890 = vld [vmem:[%s5] sm:$0x1]
        %v892 = vlaneseq
        %v893 = vshrl.u32 %v892, 7
        %v894 = vsub.s32 0, %v893
        %v895 = vrot.slane %v890, %v894
        %v897 = vmul.f32 %v888, %v895
        %v898 = vmul.f32 %v889, %v895
        %v899 = vld [vmem:[%s6] sm:$0x1]
        %v901 = vlaneseq
        %v902 = vshrl.u32 %v901, 7
        %v903 = vsub.s32 0, %v902
        %v904 = vrot.slane %v899, %v903
        %v906 = vadd.f32 %v897, %v904
        %v907 = vadd.f32 %v898, %v904
        %v908 = vmax.f32 %v906, 0.0
        %v909 = vmax.f32 %v907, 0.0
        %v910 = vpack.c.bf16 %v909, %v908
        %v911 = vld [vmem:[%s7] sm:$0xff]
        %v912 = vld [vmem:[%s7 + $0x8] sm:$0xff]
        %v913 = vld [vmem:[%s7 + $0x10] sm:$0xff]
        %v914 = vld [vmem:[%s7 + $0x18] sm:$0xff]
        %v915 = vld [vmem:[%s7 + $0x20] sm:$0xff]
        %v916 = vld [vmem:[%s7 + $0x28] sm:$0xff]
        %v917 = vld [vmem:[%s7 + $0x30] sm:$0xff]
        %v918 = vld [vmem:[%s7 + $0x38] sm:$0xff]
        %v927 = vunpack.c.l.b16 %v911
        %v928 = vunpack.c.h.b16 %v911
        %v929 = vunpack.c.l.b16 %v912
        %v930 = vunpack.c.h.b16 %v912
        %v931 = vunpack.c.l.b16 %v913
        %v932 = vunpack.c.h.b16 %v913
        %v933 = vunpack.c.l.b16 %v914
        %v934 = vunpack.c.h.b16 %v914
        %v935 = vunpack.c.l.b16 %v915
        %v936 = vunpack.c.h.b16 %v915
        %v937 = vunpack.c.l.b16 %v916
        %v938 = vunpack.c.h.b16 %v916
        %v939 = vunpack.c.l.b16 %v917
        %v940 = vunpack.c.h.b16 %v917
        %v941 = vunpack.c.l.b16 %v918
        %v942 = vunpack.c.h.b16 %v918
        %v943 = vpack.c.b16 %v929, %v927
        %v944 = vpack.c.b16 %v930, %v928
        %v945 = vpack.c.b16 %v933, %v931
        %v946 = vpack.c.b16 %v934, %v932
        %v947 = vpack.c.b16 %v937, %v935
        %v948 = vpack.c.b16 %v938, %v936
        %v949 = vpack.c.b16 %v941, %v939
        %v950 = vpack.c.b16 %v942, %v940
        %v960 = vsel %vm697, %v910, 0
        %962 = vmatprep.subr.bf16.mxu0 %v944
        %963 = vmatpush1.bf16.msra.mxu0 %v943
        %964 = vmatprep.subr.bf16.mxu0 %v946
        %965 = vmatpush1.bf16.msra.mxu0 %v945
        %966 = vmatprep.subr.bf16.mxu0 %v948
        %967 = vmatpush1.bf16.msra.mxu0 %v947
        %968 = vmatprep.subr.bf16.mxu0 %v950
        %969 = vmatpush1.bf16.msra.mxu0 %v949
        %970 = vmatprep.subr.bf16.mxu0 0
        %971 = vmatpush1.bf16.msra.mxu0 0
        %972 = vmatprep.subr.bf16.mxu0 0
        %973 = vmatpush1.bf16.msra.mxu0 0
        %974 = vmatprep.subr.bf16.mxu0 0
        %975 = vmatpush1.bf16.msra.mxu0 0
        %976 = vmatprep.subr.bf16.mxu0 0
        %977 = vmatpush1.bf16.msra.mxu0 0
        %978 = vmatprep.subr.bf16.mxu0 0
        %979 = vmatpush1.bf16.msra.mxu0 0
        %980 = vmatprep.subr.bf16.mxu0 0
        %981 = vmatpush1.bf16.msra.mxu0 0
        %982 = vmatprep.subr.bf16.mxu0 0
        %983 = vmatpush1.bf16.msra.mxu0 0
        %984 = vmatprep.subr.bf16.mxu0 0
        %985 = vmatpush1.bf16.msra.mxu0 0
        %986 = vmatprep.subr.bf16.mxu0 0
        %987 = vmatpush1.bf16.msra.mxu0 0
        %988 = vmatprep.subr.bf16.mxu0 0
        %989 = vmatpush1.bf16.msra.mxu0 0
        %990 = vmatprep.subr.bf16.mxu0 0
        %991 = vmatpush1.bf16.msra.mxu0 0
        %992 = vmatprep.subr.bf16.mxu0 0
        %993 = vmatpush1.bf16.msra.mxu0 0
        %994 = vmatprep.mubr.bf16.mxu0 0
        %995 = vmatmul.mubr.bf16.gmra.mrb[0].mxu0 %v960
        %v996 = vpop.f32.mrb[0].mxu0
        %v997 = vadd.f32 0.0, %v996
        %v998 = vpop.f32.mrb[0].mxu0
        %v999 = vadd.f32 0.0, %v998
        %v1000 = vpop.f32.mrb[0].mxu0
        %v1001 = vadd.f32 0.0, %v1000
        %v1002 = vpop.f32.mrb[0].mxu0
        %v1003 = vadd.f32 0.0, %v1002
        %1004 = vdwg.mxu0
        %v1005 = vld [vmem:[%s8] sm:$0x3]
        %v1007 = vlaneseq
        %v1008 = vshrl.u32 %v1007, 7
        %v1009 = vsub.s32 0, %v1008
        %v1010 = vrot.slane %v1005, %v1009
        %v1011 = vlaneseq
        %v1012 = vshrl.u32 %v1011, 7
        %v1013 = vsub.s32 1, %v1012
        %v1014 = vrot.slane %v1005, %v1013
        %v1017 = vmul.f32 %v997, %v1010
        %v1018 = vmul.f32 %v999, %v1014
        %v1019 = vmul.f32 %v1001, %v1010
        %v1020 = vmul.f32 %v1003, %v1014
        %v1021 = vld [vmem:[%s9] sm:$0x3]
        %v1023 = vlaneseq
        %v1024 = vshrl.u32 %v1023, 7
        %v1025 = vsub.s32 0, %v1024
        %v1026 = vrot.slane %v1021, %v1025
        %v1027 = vlaneseq
        %v1028 = vshrl.u32 %v1027, 7
        %v1029 = vsub.s32 1, %v1028
        %v1030 = vrot.slane %v1021, %v1029
        %v1033 = vadd.f32 %v1017, %v1026
        %v1034 = vadd.f32 %v1018, %v1030
        %v1035 = vadd.f32 %v1019, %v1026
        %v1036 = vadd.f32 %v1020, %v1030
        %v1037 = vadd.f32 %v1033, %v419
        %v1038 = vadd.f32 %v1034, %v420
        %v1039 = vadd.f32 %v1035, %v421
        %v1040 = vadd.f32 %v1036, %v422
        %v1041 = vmax.f32 %v1037, 0.0
        %v1042 = vmax.f32 %v1038, 0.0
        %v1043 = vmax.f32 %v1039, 0.0
        %v1044 = vmax.f32 %v1040, 0.0
        %1045 = vst [vmem:[%s409] sm:$0xff] %v1041
        %1046 = vst [vmem:[%s409 + $0x8] sm:$0xff] %v1042
        %1047 = vst [vmem:[%s409 + $0x10] sm:$0xff] %v1043
        %1048 = vst [vmem:[%s409 + $0x18] sm:$0xff] %v1044
        %s1049 = sand.u32 %s291, 1
        %s1050 = scalar_lea.sflag [#allocation3], %s1049
        %s1051 = sand.u32 %s291, 1
        %s1052 = smul.addr %s1051, 32
        %s1053 = scalar_lea.vmem [#allocation2], %s1052
        // Predicated region
        $region69: #{tpu_custom_call.1} parent=67 // pred_check
          %p1054 = pneg %p301
        $region70: #{tpu_custom_call.1} parent=67 // pred_check_branch
          %1056 = sbr.rel (%p1054) target = $region72
        $region71: #{tpu_custom_call.1} parent=67 // pred_region
          %s1057 = smul.u32 2, %s26
          %s1059 = ssub.s32 512, 512
          %1060 = vsyncadd %s1050, %s1059
          %s1061 = smul.addr %s1057, 2
          %s1062 = smul.addr %s1061, 128
          %s1063 = scalar_lea.hbm %s12, %s1062
          %s1064 = sshll.u32 %s1053, 4
          %s1065 = int_to_ptr.vmem [resolvable:$true] %s1064
          %1070 = dma.vmem_to_hbm [thread:$0]  %s1065, 512, %s1063, %s1050, 256, 256, 16
        $region72: #{tpu_custom_call.1} parent=67 // pred_fallthru
          _
      $region68: #{tpu_custom_call.1} parent=5 // pred_fallthru
        _
      %p1071 = scmp.le.s32.totalorder 2, %s21
      // Predicated region
      $region73: #{tpu_custom_call.1} parent=5 // pred_check
        %p1072 = pneg %p1071
      $region74: #{tpu_custom_call.1} parent=5 // pred_check_branch
        %1074 = sbr.rel (%p1072) target = $region76
      $region75: #{tpu_custom_call.1} parent=5 // pred_region
        %s1075 = ssub.s32 %s21, 2
        // Predicated region
        $region77: #{tpu_custom_call.1} parent=75 // pred_check
          %p1076 = pneg %p307
        $region78: #{tpu_custom_call.1} parent=75 // pred_check_branch
          %1078 = sbr.rel (%p1076) target = $region80
        $region79: #{tpu_custom_call.1} parent=75 // pred_region
          %s1079 = sand.u32 %s292, 1
          %s1080 = scalar_lea.sflag [#allocation3], %s1079
          %s1081 = sand.u32 %s292, 1
          %s1082 = smul.addr %s1081, 32
          %s1083 = scalar_lea.vmem [#allocation2], %s1082
          %1084 = dma.done %s1080, 512
        $region80: #{tpu_custom_call.1} parent=75 // pred_fallthru
          _
      $region76: #{tpu_custom_call.1} parent=5 // pred_fallthru
        _
    $region6: #{tpu_custom_call.1} parent=1 // loop_footer
      %s25 = sadd.s32 1, %s21
    $region7: #{tpu_custom_call.1} parent=1 // loop_footer_branch
      %20 = sbr.rel target = $region3
    $region8: #{tpu_custom_call.1} parent=1 // loop_exit
      _
    %1085 = vsyncpa [#allocation3], 1
    %s1086 = scalar_lea.sflag [#allocation3], 1
    %1087 = vsyncpa %s1086, 1

</llo_original>
